<compile_context>
chip_gen: v7x
topology: tpu7x:2x2x1
jax: 0.10.0
libtpu: 0.0.40
codegen_flags: <defaults>
</compile_context>

<pallas_src>
import functools

import numpy as np
import jax
import jax.numpy as jnp
from jax import lax
from jax.experimental import pallas as pl
from jax.experimental.pallas import tpu as pltpu


_COSINE_EPS = 1e-8   # torch.nn.CosineSimilarity default eps (clamps ||s||*||c||)
_L2_EPS = 1e-6       # torch.nn.PairwiseDistance default eps (added to s - c)

# Contract dim 1 of lhs with dim 1 of rhs (lhs @ rhs.T) -- the standard
# "transposed-B" MXU pattern.
_TRANS_B_DIMS = (((1,), (1,)), ((), ()))


def _row_sums_as_lanes(ones, values, precision):
    """Sum `values` [TB, F] over axis 1, returned as a lane-dense [1, TB] row.

    Implemented as ones[8, F] @ values^T on the MXU: the batch dimension comes
    out on the lane axis (no cross-lane relayout) and the reduction rides the
    otherwise-idle MXU, keeping the VPU free for the elementwise work.
    HIGHEST precision keeps the f32 contraction at f32 accuracy.
    """
    sums = lax.dot_general(ones, values, _TRANS_B_DIMS,
                           preferred_element_type=jnp.float32,
                           precision=precision)   # [8, TB], rows identical
    return sums[:1, :]                            # [1, TB]


def _cosine_kernel(feat, s_off, c_off, precision, x_ref, o_ref):
    # x_ref: [TB, C] batch tile of x ; o_ref: [1, 1, TB] lane-dense output row.
    s = x_ref[:, s_off:s_off + feat].astype(jnp.float32)   # [TB, F]
    c = x_ref[:, c_off:c_off + feat].astype(jnp.float32)   # [TB, F]
    ones = jnp.ones((8, feat), dtype=jnp.float32)           # hoisted: built once per step
    # TODO(synk): if the vector-extended (MXU push) slot binds on v7x, move the
    # ns2/nc2 reductions to jnp.sum(axis=-1) on the idle XLUs and keep only the
    # dot on the MXU.
    dot = _row_sums_as_lanes(ones, s * c, precision)         # [1, TB]
    ns2 = _row_sums_as_lanes(ones, s * s, precision)         # [1, TB]
    nc2 = _row_sums_as_lanes(ones, c * c, precision)         # [1, TB]
    # dot / max(||s||*||c||, eps)  ==  dot * rsqrt(max(ns2*nc2, eps^2))
    denom2 = jnp.maximum(ns2 * nc2, jnp.float32(_COSINE_EPS * _COSINE_EPS))
    o_ref[...] = (dot * lax.rsqrt(denom2))[None].astype(o_ref.dtype)   # [1, 1, TB]


def _l2_kernel(feat, s_off, c_off, precision, x_ref, o_ref):
    s = x_ref[:, s_off:s_off + feat].astype(jnp.float32)
    c = x_ref[:, c_off:c_off + feat].astype(jnp.float32)
    ones = jnp.ones((8, feat), dtype=jnp.float32)
    d = s - c + jnp.float32(_L2_EPS)          # torch PairwiseDistance semantics
    dist2 = _row_sums_as_lanes(ones, d * d, precision)       # [1, TB]
    o_ref[...] = jnp.sqrt(dist2)[None].astype(o_ref.dtype)


def _device_kind():
    try:
        return jax.devices()[0].device_kind.lower()
    except Exception:  # pragma: no cover - CPU/interpret fallback
        return ""


def _pick_batch_tile(batch, n_cols, itemsize, budget_bytes):
    """Rows per block, sized so the double-buffered input block PLUS the
    in-kernel f32 live intermediates (s/c casts + three [TB,F] products) fit a
    per-generation VMEM budget."""
    bytes_per_row = 2 * n_cols * itemsize + 5 * (n_cols // 2) * 4
    max_rows = max(8, budget_bytes // max(1, bytes_per_row))
    return int(min(2048, max_rows))


def simnet_forward(x, source_inds, candidate_inds, similarity_function="cosine",
                   batch_tile=None, precision=lax.Precision.HIGHEST):
    """Pallas implementation of SimNet.forward. x: [B, 2F] -> [B, 1]."""
    src = np.asarray(source_inds)
    cand = np.asarray(candidate_inds)
    assert src.shape == cand.shape, "source/candidate feature counts differ"
    feat = int(src.shape[0])
    assert x.shape[1] == 2 * feat, (x.shape, feat)

    def _contig(a):
        return a.size > 0 and bool(
            np.array_equal(a, np.arange(int(a[0]), int(a[0]) + a.size)))

    if _contig(src) and _contig(cand):
        # FeatureManager layout: both sides are contiguous column ranges.
        # Pass x straight through; the kernel slices it with static offsets,
        # so x is read from HBM exactly once and no gathered copies are made.
        x_in, s_off, c_off = x, int(src[0]), int(cand[0])
        # TODO(synk): if s_off/c_off are not multiples of 128 (feature count not
        # lane-aligned), Mosaic inserts a per-step cross-lane relayout of the
        # misaligned slice; padding the column groups to 128 columns would
        # remove it at the cost of an extra HBM repack.
    else:
        # TODO(synk): non-contiguous feature indices fall back to ONE fused XLA
        # gather into a single [B, 2F] array; an in-kernel gather via
        # PrefetchScalarGridSpec-prefetched index arrays would avoid the extra
        # HBM read+write on this bandwidth-bound op.
        order = jnp.asarray(np.concatenate([src, cand]), dtype=jnp.int32)
        x_in, s_off, c_off = jnp.take(x, order, axis=1), 0, feat

    batch, n_cols = x_in.shape
    itemsize = jnp.dtype(x_in.dtype).itemsize

    kind = _device_kind()
    is_v7x = "v7" in kind
    # v7x has only 64 MiB physical VMEM; v5e/v6e have 128 MiB -> bigger blocks.
    vmem_limit = (32 if is_v7x else 64) * 1024 * 1024
    vmem_budget = (10 if is_v7x else 20) * 1024 * 1024

    # Lane-align (128) the batch tile whenever possible so the output block is
    # lane-dense and the MXU N dimension is full; otherwise fall back to the
    # dtype's sublane packing (8 rows f32 / 16 bf16 / 32 int8).
    sublane_pack = max(8, 32 // itemsize)
    align = 128 if batch >= 128 else sublane_pack

    tile = batch_tile if batch_tile is not None else _pick_batch_tile(
        batch, n_cols, itemsize, vmem_budget)

    # Never collapse to a single grid block when the batch is big enough to
    # split: >=2 blocks keep BlockSpec double-buffering overlapping DMA with
    # compute; >=4 blocks give v7x's two TensorCores something to shard.
    min_blocks = 4 if is_v7x else 2
    if batch >= min_blocks * align:
        tile = min(tile, max(align, (pl.cdiv(batch, min_blocks) // align) * align))

    if tile >= batch:
        tile = batch                              # block == full array: always legal
    else:
        tile = max(align, (tile // align) * align)  # aligned block rows
    num_blocks = pl.cdiv(batch, tile)             # ragged last block is handled

    if similarity_function == "cosine":
        kernel = functools.partial(_cosine_kernel, feat, s_off, c_off, precision)
    elif similarity_function == "l2":
        kernel = functools.partial(_l2_kernel, feat, s_off, c_off, precision)
    else:
        raise ValueError(f"Unknown similarity function '{similarity_function}'.")

    if is_v7x and num_blocks >= 2 and hasattr(pltpu, "CORE_PARALLEL"):
        # Only core_parallel actually shards a grid axis across v7x's 2 TCs.
        dim_sem = (pltpu.CORE_PARALLEL,)
    else:
        dim_sem = ("parallel",)

    out = pl.pallas_call(
        kernel,
        out_shape=jax.ShapeDtypeStruct((num_blocks, 1, tile), jnp.float32),
        grid=(num_blocks,),
        in_specs=[pl.BlockSpec((tile, n_cols), lambda i: (i, 0))],
        # Lane-dense output row per batch block (unmasked vector stores).
        out_specs=pl.BlockSpec((1, 1, tile), lambda i: (i, 0, 0)),
        compiler_params=pltpu.CompilerParams(
            dimension_semantics=dim_sem,
            vmem_limit_bytes=vmem_limit,
        ),
    )(x_in)

    # [num_blocks, 1, tile] -> [B, 1]  (drop the padded tail of the last block;
    # pad-lane values are never consumed).
    return out.reshape(num_blocks * tile)[:batch].reshape(batch, 1)


def _reference(x, source_inds, candidate_inds, similarity_function="cosine"):
    """Pure-JAX reference matching the torch semantics."""
    s = x[:, np.asarray(source_inds)].astype(jnp.float32)
    c = x[:, np.asarray(candidate_inds)].astype(jnp.float32)
    if similarity_function == "cosine":
        dot = jnp.sum(s * c, axis=1)
        denom = jnp.maximum(
            jnp.linalg.norm(s, axis=1) * jnp.linalg.norm(c, axis=1), _COSINE_EPS)
        sim = dot / denom
    else:
        d = s - c + _L2_EPS
        sim = jnp.sqrt(jnp.sum(d * d, axis=1))
    return sim.reshape((-1, 1))


if __name__ == "__main__":
    # SimNet has no learned parameters; the model is the feature split + the
    # similarity. Synthetic FeatureManager layout: source features occupy
    # columns [0, F), candidate features occupy columns [F, 2F).
    B, F = 128, 128
    key = jax.random.PRNGKey(0)
    k_main, k_ragged = jax.random.split(key)
    x = jax.random.normal(k_main, (B, 2 * F), dtype=jnp.float32)
    source_inds = np.arange(0, F, dtype=np.int32)
    candidate_inds = np.arange(F, 2 * F, dtype=np.int32)

    # HIGHEST-precision MXU reductions keep the contraction at f32 accuracy,
    # so the tolerance is tight (was 5e-3 with DEFAULT-precision bf16 passes).
    tol = dict(atol=1e-4, rtol=1e-4)

    out_cos = jax.block_until_ready(
        simnet_forward(x, source_inds, candidate_inds, "cosine"))
    ref_cos = _reference(x, source_inds, candidate_inds, "cosine")
    assert out_cos.shape == (B, 1), out_cos.shape
    assert jnp.allclose(out_cos, ref_cos, **tol), "cosine mismatch"

    out_l2 = jax.block_until_ready(
        simnet_forward(x, source_inds, candidate_inds, "l2"))
    ref_l2 = _reference(x, source_inds, candidate_inds, "l2")
    assert out_l2.shape == (B, 1), out_l2.shape
    assert jnp.allclose(out_l2, ref_l2, **tol), "l2 mismatch"

    # Multi-block + ragged batch path (batch not a multiple of the tile),
    # exercising the pipelined multi-block grid.
    B2 = 300
    x2 = jax.random.normal(k_ragged, (B2, 2 * F), dtype=jnp.float32)
    out2 = jax.block_until_ready(
        simnet_forward(x2, source_inds, candidate_inds, "cosine", batch_tile=128))
    ref2 = _reference(x2, source_inds, candidate_inds, "cosine")
    assert out2.shape == (B2, 1), out2.shape
    assert jnp.allclose(out2, ref2, **tol), "ragged/tiled cosine mismatch"

    print("KERNEL_OK")
</pallas_src>

<mosaic_0001>
module attributes {stable_mosaic.version = 11 : i64} {
  func.func @_cosine_kernel(%arg0: i32, %arg1: memref<128x256xf32, #tpu.memory_space<vmem>>, %arg2: memref<1x1x128xf32, #tpu.memory_space<vmem>>) attributes {dimension_semantics = [#tpu.dimension_semantics<parallel>], iteration_bounds = array<i64: 1>, scalar_prefetch = 0 : i64, scratch_operands = 0 : i64, tpu.core_type = #tpu.core_type<tc>, window_params = [{transform_indices = @transform_0, window_bounds = array<i64: 128, 256>}, {transform_indices = @transform_1, window_bounds = array<i64: 1, 1, 128>}]} {
    %c0 = arith.constant 0 : index
    %c0_0 = arith.constant 0 : index
    %0 = vector.load %arg1[%c0, %c0_0] : memref<128x256xf32, #tpu.memory_space<vmem>>, vector<128x128xf32>
    %c0_1 = arith.constant 0 : index
    %c128 = arith.constant 128 : index
    %1 = vector.load %arg1[%c0_1, %c128] : memref<128x256xf32, #tpu.memory_space<vmem>>, vector<128x128xf32>
    %cst = arith.constant 1.000000e+00 : f32
    %2 = vector.broadcast %cst : f32 to vector<8x128xf32>
    %3 = arith.mulf %0, %1 : vector<128x128xf32>
    %cst_2 = arith.constant dense<0.000000e+00> : vector<8x128xf32>
    %4 = tpu.matmul %2, %3, %cst_2 {dimension_numbers = #tpu.dot_dimension_numbers<[1], [1], [0], [0], [0, 0, 1, 0], [], []>, precision = #tpu.contract_precision<fp32>} : vector<8x128xf32>, vector<128x128xf32>, vector<8x128xf32> -> vector<8x128xf32>
    %5 = vector.extract_strided_slice %4 {offsets = [0, 0], sizes = [1, 128], strides = [1, 1]} : vector<8x128xf32> to vector<1x128xf32>
    %6 = arith.mulf %0, %0 : vector<128x128xf32>
    %cst_3 = arith.constant dense<0.000000e+00> : vector<8x128xf32>
    %7 = tpu.matmul %2, %6, %cst_3 {dimension_numbers = #tpu.dot_dimension_numbers<[1], [1], [0], [0], [0, 0, 1, 0], [], []>, precision = #tpu.contract_precision<fp32>} : vector<8x128xf32>, vector<128x128xf32>, vector<8x128xf32> -> vector<8x128xf32>
    %8 = vector.extract_strided_slice %7 {offsets = [0, 0], sizes = [1, 128], strides = [1, 1]} : vector<8x128xf32> to vector<1x128xf32>
    %9 = arith.mulf %1, %1 : vector<128x128xf32>
    %cst_4 = arith.constant dense<0.000000e+00> : vector<8x128xf32>
    %10 = tpu.matmul %2, %9, %cst_4 {dimension_numbers = #tpu.dot_dimension_numbers<[1], [1], [0], [0], [0, 0, 1, 0], [], []>, precision = #tpu.contract_precision<fp32>} : vector<8x128xf32>, vector<128x128xf32>, vector<8x128xf32> -> vector<8x128xf32>
    %11 = vector.extract_strided_slice %10 {offsets = [0, 0], sizes = [1, 128], strides = [1, 1]} : vector<8x128xf32> to vector<1x128xf32>
    %12 = arith.mulf %8, %11 : vector<1x128xf32>
    %cst_5 = arith.constant 1.000000e-16 : f32
    %13 = vector.broadcast %cst_5 : f32 to vector<1x128xf32>
    %14 = arith.maximumf %12, %13 : vector<1x128xf32>
    %15 = math.rsqrt %14 : vector<1x128xf32>
    %16 = arith.mulf %5, %15 : vector<1x128xf32>
    %17 = vector.shape_cast %16 : vector<1x128xf32> to vector<1x1x128xf32>
    %c0_6 = arith.constant 0 : index
    %c0_7 = arith.constant 0 : index
    %c0_8 = arith.constant 0 : index
    %18 = vector.load %arg2[%c0_6, %c0_7, %c0_8] : memref<1x1x128xf32, #tpu.memory_space<vmem>>, vector<1x1x128xf32>
    tpu.vector_store %arg2[%c0_6, %c0_7, %c0_8], %17 {strides = array<i32>} : memref<1x1x128xf32, #tpu.memory_space<vmem>>, vector<1x1x128xf32>,
    return
  }
  func.func @transform_0(%arg0: i32) -> (i32, i32) {
    %c0_i32 = arith.constant 0 : i32
    %c0_i32_0 = arith.constant 0 : i32
    return %arg0, %c0_i32 : i32, i32
  }
  func.func @transform_1(%arg0: i32) -> (i32, i32, i32) {
    %c0_i32 = arith.constant 0 : i32
    %c0_i32_0 = arith.constant 0 : i32
    %c0_i32_1 = arith.constant 0 : i32
    return %arg0, %c0_i32, %c0_i32_0 : i32, i32, i32
  }
}

</mosaic_0001>

<llo_original>
// kernel: tpu_custom_call.1
$region0: #{tpu_custom_call.1}
  #allocation0 [shape = 'u32[]', space=smem, size = 0x4, offset = 0x4, fixed_abs, tag = 'smem constant byte address 0x4 - core index']
  #allocation1 [shape = 'u32[144,128]{1,0:T(1,128)}', space=vmem, size = 0x12000, scoped, tag = 'internal scratch']
  %s0 = inlined_call_operand.hbm [shape: f32[128,256], index: 0, kind: input, shape index: {}]
  %s1 = inlined_call_operand.hbm [shape: f32[1,1,128], index: 1, kind: output, shape index: {}]
  %s2 = sld [smem:[#allocation0]]
  $region18: #{tpu_custom_call.1} parent=0
    _
  %s4 = ssub.s32 1, %s2
  %s5 = scalar_select 0, %s4, %s2
  $region1: #{tpu_custom_call.1} parent=0
    #allocation2 [shape = 'u8[131072]{0}', space=vmem, size = 0x20000, scoped, tag = 'input window, operand 0, single buffered']
    #allocation3 [shape = 's32[1]{0}', space=sflag, size = 0x4, scoped, tag = 'scoped memory for tpu_custom_call.1']
    #allocation4 [shape = 's32[1]{0}', space=sflag, size = 0x4, scoped, tag = 'scoped memory for tpu_custom_call.1']
    #allocation5 [shape = 'u8[512]{0}', space=vmem, size = 0x400, scoped, tag = 'output window, operand 0, single buffered']
    %6 = vsyncpa [#allocation3], 0
    %7 = vsyncpa [#allocation4], 0
    // Predicated region
    $region2: #{tpu_custom_call.1} parent=1 // pred_check
      _
    $region3: #{tpu_custom_call.1} parent=1 // pred_check_branch
      %9 = sbr.rel (0) target = $region5
    $region4: #{tpu_custom_call.1} parent=1 // pred_region
      %s11 = ssub.s32 4096, 4096
      %12 = vsyncadd [#allocation3], %s11
      %s13 = sshll.u32 [#allocation2], 4
      %s14 = int_to_ptr.vmem [resolvable:$true] %s13
      %19 = dma.hbm_to_vmem [thread:$0]  %s0, 4096, %s14, [#allocation3], 256, 256, 16
    $region5: #{tpu_custom_call.1} parent=1 // pred_fallthru
      _
    // Predicated region
    $region6: #{tpu_custom_call.1} parent=1 // pred_check
      _
    $region7: #{tpu_custom_call.1} parent=1 // pred_check_branch
      %21 = sbr.rel (0) target = $region9
    $region8: #{tpu_custom_call.1} parent=1 // pred_region
      %22 = dma.done [#allocation3], 4096
    $region9: #{tpu_custom_call.1} parent=1 // pred_fallthru
      _
    %v23 = vld [vmem:[#allocation2] sm:$0xff]
    %v24 = vld [vmem:[#allocation2 + $0x10] sm:$0xff]
    %v25 = vld [vmem:[#allocation2 + $0x20] sm:$0xff]
    %v26 = vld [vmem:[#allocation2 + $0x30] sm:$0xff]
    %v27 = vld [vmem:[#allocation2 + $0x40] sm:$0xff]
    %v28 = vld [vmem:[#allocation2 + $0x50] sm:$0xff]
    %v29 = vld [vmem:[#allocation2 + $0x60] sm:$0xff]
    %v30 = vld [vmem:[#allocation2 + $0x70] sm:$0xff]
    %v31 = vld [vmem:[#allocation2 + $0x80] sm:$0xff]
    %v32 = vld [vmem:[#allocation2 + $0x90] sm:$0xff]
    %v33 = vld [vmem:[#allocation2 + $0xa0] sm:$0xff]
    %v34 = vld [vmem:[#allocation2 + $0xb0] sm:$0xff]
    %v35 = vld [vmem:[#allocation2 + $0xc0] sm:$0xff]
    %v36 = vld [vmem:[#allocation2 + $0xd0] sm:$0xff]
    %v37 = vld [vmem:[#allocation2 + $0xe0] sm:$0xff]
    %v38 = vld [vmem:[#allocation2 + $0xf0] sm:$0xff]
    %v39 = vld [vmem:[#allocation2 + $0x8] sm:$0xff]
    %v40 = vld [vmem:[#allocation2 + $0x18] sm:$0xff]
    %v41 = vld [vmem:[#allocation2 + $0x28] sm:$0xff]
    %v42 = vld [vmem:[#allocation2 + $0x38] sm:$0xff]
    %v43 = vld [vmem:[#allocation2 + $0x48] sm:$0xff]
    %v44 = vld [vmem:[#allocation2 + $0x58] sm:$0xff]
    %v45 = vld [vmem:[#allocation2 + $0x68] sm:$0xff]
    %v46 = vld [vmem:[#allocation2 + $0x78] sm:$0xff]
    %v47 = vld [vmem:[#allocation2 + $0x88] sm:$0xff]
    %v48 = vld [vmem:[#allocation2 + $0x98] sm:$0xff]
    %v49 = vld [vmem:[#allocation2 + $0xa8] sm:$0xff]
    %v50 = vld [vmem:[#allocation2 + $0xb8] sm:$0xff]
    %v51 = vld [vmem:[#allocation2 + $0xc8] sm:$0xff]
    %v52 = vld [vmem:[#allocation2 + $0xd8] sm:$0xff]
    %v53 = vld [vmem:[#allocation2 + $0xe8] sm:$0xff]
    %v54 = vld [vmem:[#allocation2 + $0xf8] sm:$0xff]
    %v55 = vmul.f32 %v23, %v39
    %v56 = vmul.f32 %v24, %v40
    %v57 = vmul.f32 %v25, %v41
    %v58 = vmul.f32 %v26, %v42
    %v59 = vmul.f32 %v27, %v43
    %v60 = vmul.f32 %v28, %v44
    %v61 = vmul.f32 %v29, %v45
    %v62 = vmul.f32 %v30, %v46
    %v63 = vmul.f32 %v31, %v47
    %v64 = vmul.f32 %v32, %v48
    %v65 = vmul.f32 %v33, %v49
    %v66 = vmul.f32 %v34, %v50
    %v67 = vmul.f32 %v35, %v51
    %v68 = vmul.f32 %v36, %v52
    %v69 = vmul.f32 %v37, %v53
    %v70 = vmul.f32 %v38, %v54
    %71 = vmatprep.subr.mxu0 0.0
    %v72 = vand.u32 %v55, 4294901760
    %73 = vmatpush1.xpose.msra.mxu0 %v72
    %74 = vmatprep.subr.mxu0 0.0
    %v75 = vand.u32 %v56, 4294901760
    %76 = vmatpush1.xpose.msra.mxu0 %v75
    %77 = vmatprep.subr.mxu0 0.0
    %v78 = vand.u32 %v57, 4294901760
    %79 = vmatpush1.xpose.msra.mxu0 %v78
    %80 = vmatprep.subr.mxu0 0.0
    %v81 = vand.u32 %v58, 4294901760
    %82 = vmatpush1.xpose.msra.mxu0 %v81
    %83 = vmatprep.subr.mxu0 0.0
    %v84 = vand.u32 %v59, 4294901760
    %85 = vmatpush1.xpose.msra.mxu0 %v84
    %86 = vmatprep.subr.mxu0 0.0
    %v87 = vand.u32 %v60, 4294901760
    %88 = vmatpush1.xpose.msra.mxu0 %v87
    %89 = vmatprep.subr.mxu0 0.0
    %v90 = vand.u32 %v61, 4294901760
    %91 = vmatpush1.xpose.msra.mxu0 %v90
    %92 = vmatprep.subr.mxu0 0.0
    %v93 = vand.u32 %v62, 4294901760
    %94 = vmatpush1.xpose.msra.mxu0 %v93
    %95 = vmatprep.subr.mxu0 0.0
    %v96 = vand.u32 %v63, 4294901760
    %97 = vmatpush1.xpose.msra.mxu0 %v96
    %98 = vmatprep.subr.mxu0 0.0
    %v99 = vand.u32 %v64, 4294901760
    %100 = vmatpush1.xpose.msra.mxu0 %v99
    %101 = vmatprep.subr.mxu0 0.0
    %v102 = vand.u32 %v65, 4294901760
    %103 = vmatpush1.xpose.msra.mxu0 %v102
    %104 = vmatprep.subr.mxu0 0.0
    %v105 = vand.u32 %v66, 4294901760
    %106 = vmatpush1.xpose.msra.mxu0 %v105
    %107 = vmatprep.subr.mxu0 0.0
    %v108 = vand.u32 %v67, 4294901760
    %109 = vmatpush1.xpose.msra.mxu0 %v108
    %110 = vmatprep.subr.mxu0 0.0
    %v111 = vand.u32 %v68, 4294901760
    %112 = vmatpush1.xpose.msra.mxu0 %v111
    %113 = vmatprep.subr.mxu0 0.0
    %v114 = vand.u32 %v69, 4294901760
    %115 = vmatpush1.xpose.msra.mxu0 %v114
    %116 = vmatprep.subr.mxu0 0.0
    %v117 = vand.u32 %v70, 4294901760
    %118 = vmatpush1.xpose.msra.mxu0 %v117
    %119 = vmatprep.subr.mxu0 0.0
    %120 = vmatpush1.xpose.msra.mxu0 0.0
    %121 = vmatprep.subr.mxu0 0.0
    %122 = vmatpush1.xpose.msra.mxu0 0.0
    %123 = vmatprep.subr.mxu0 0.0
    %124 = vmatpush1.xpose.msra.mxu0 0.0
    %125 = vmatprep.subr.mxu0 0.0
    %126 = vmatpush1.xpose.msra.mxu0 0.0
    %127 = vmatprep.subr.mxu0 0.0
    %128 = vmatpush1.xpose.msra.mxu0 0.0
    %129 = vmatprep.subr.mxu0 0.0
    %130 = vmatpush1.xpose.msra.mxu0 0.0
    %131 = vmatprep.subr.mxu0 0.0
    %132 = vmatpush1.xpose.msra.mxu0 0.0
    %133 = vmatprep.subr.mxu0 0.0
    %134 = vmatpush1.xpose.msra.mxu0 0.0
    %135 = vmatprep.subr.mxu0 0.0
    %136 = vmatpush1.xpose.msra.mxu0 0.0
    %137 = vmatprep.subr.mxu0 0.0
    %138 = vmatpush1.xpose.msra.mxu0 0.0
    %139 = vmatprep.subr.mxu0 0.0
    %140 = vmatpush1.xpose.msra.mxu0 0.0
    %141 = vmatprep.subr.mxu0 0.0
    %142 = vmatpush1.xpose.msra.mxu0 0.0
    %143 = vmatprep.subr.mxu0 0.0
    %144 = vmatpush1.xpose.msra.mxu0 0.0
    %145 = vmatprep.subr.mxu0 0.0
    %146 = vmatpush1.xpose.msra.mxu0 0.0
    %147 = vmatprep.subr.mxu0 0.0
    %148 = vmatpush1.xpose.msra.mxu0 0.0
    %149 = vmatprep.subr.mxu0 0.0
    %150 = vmatpush1.xpose.msra.mxu0 0.0
    %151 = vmatprep.mubr.f32.mxu0 0.0
    %152 = vmatmul.mubr.f32.gmra.mrb[0].mxu0 0.0
    %v153 = vpop.f32.mrb[0].mxu0
    %v154 = vadd.f32 0.0, %v153
    %v155 = vpop.f32.mrb[0].mxu0
    %156 = vdwg.mxu0
    %157 = vmatprep.subr.mxu0 0.0
    %v158 = vand.u32 %v55, 4294901760
    %v159 = vsub.f32 %v55, %v158
    %v160 = vand.u32 %v159, 4294901760
    %v161 = vsub.f32 %v159, %v160
    %v162 = vand.u32 %v161, 4294901760
    %163 = vmatpush1.xpose.msra.mxu0 %v162
    %164 = vmatprep.subr.mxu0 0.0
    %v165 = vand.u32 %v56, 4294901760
    %v166 = vsub.f32 %v56, %v165
    %v167 = vand.u32 %v166, 4294901760
    %v168 = vsub.f32 %v166, %v167
    %v169 = vand.u32 %v168, 4294901760
    %170 = vmatpush1.xpose.msra.mxu0 %v169
    %171 = vmatprep.subr.mxu0 0.0
    %v172 = vand.u32 %v57, 4294901760
    %v173 = vsub.f32 %v57, %v172
    %v174 = vand.u32 %v173, 4294901760
    %v175 = vsub.f32 %v173, %v174
    %v176 = vand.u32 %v175, 4294901760
    %177 = vmatpush1.xpose.msra.mxu0 %v176
    %178 = vmatprep.subr.mxu0 0.0
    %v179 = vand.u32 %v58, 4294901760
    %v180 = vsub.f32 %v58, %v179
    %v181 = vand.u32 %v180, 4294901760
    %v182 = vsub.f32 %v180, %v181
    %v183 = vand.u32 %v182, 4294901760
    %184 = vmatpush1.xpose.msra.mxu0 %v183
    %185 = vmatprep.subr.mxu0 0.0
    %v186 = vand.u32 %v59, 4294901760
    %v187 = vsub.f32 %v59, %v186
    %v188 = vand.u32 %v187, 4294901760
    %v189 = vsub.f32 %v187, %v188
    %v190 = vand.u32 %v189, 4294901760
    %191 = vmatpush1.xpose.msra.mxu0 %v190
    %192 = vmatprep.subr.mxu0 0.0
    %v193 = vand.u32 %v60, 4294901760
    %v194 = vsub.f32 %v60, %v193
    %v195 = vand.u32 %v194, 4294901760
    %v196 = vsub.f32 %v194, %v195
    %v197 = vand.u32 %v196, 4294901760
    %198 = vmatpush1.xpose.msra.mxu0 %v197
    %199 = vmatprep.subr.mxu0 0.0
    %v200 = vand.u32 %v61, 4294901760
    %v201 = vsub.f32 %v61, %v200
    %v202 = vand.u32 %v201, 4294901760
    %v203 = vsub.f32 %v201, %v202
    %v204 = vand.u32 %v203, 4294901760
    %205 = vmatpush1.xpose.msra.mxu0 %v204
    %206 = vmatprep.subr.mxu0 0.0
    %v207 = vand.u32 %v62, 4294901760
    %v208 = vsub.f32 %v62, %v207
    %v209 = vand.u32 %v208, 4294901760
    %v210 = vsub.f32 %v208, %v209
    %v211 = vand.u32 %v210, 4294901760
    %212 = vmatpush1.xpose.msra.mxu0 %v211
    %213 = vmatprep.subr.mxu0 0.0
    %v214 = vand.u32 %v63, 4294901760
    %v215 = vsub.f32 %v63, %v214
    %v216 = vand.u32 %v215, 4294901760
    %v217 = vsub.f32 %v215, %v216
    %v218 = vand.u32 %v217, 4294901760
    %219 = vmatpush1.xpose.msra.mxu0 %v218
    %220 = vmatprep.subr.mxu0 0.0
    %v221 = vand.u32 %v64, 4294901760
    %v222 = vsub.f32 %v64, %v221
    %v223 = vand.u32 %v222, 4294901760
    %v224 = vsub.f32 %v222, %v223
    %v225 = vand.u32 %v224, 4294901760
    %226 = vmatpush1.xpose.msra.mxu0 %v225
    %227 = vmatprep.subr.mxu0 0.0
    %v228 = vand.u32 %v65, 4294901760
    %v229 = vsub.f32 %v65, %v228
    %v230 = vand.u32 %v229, 4294901760
    %v231 = vsub.f32 %v229, %v230
    %v232 = vand.u32 %v231, 4294901760
    %233 = vmatpush1.xpose.msra.mxu0 %v232
    %234 = vmatprep.subr.mxu0 0.0
    %v235 = vand.u32 %v66, 4294901760
    %v236 = vsub.f32 %v66, %v235
    %v237 = vand.u32 %v236, 4294901760
    %v238 = vsub.f32 %v236, %v237
    %v239 = vand.u32 %v238, 4294901760
    %240 = vmatpush1.xpose.msra.mxu0 %v239
    %241 = vmatprep.subr.mxu0 0.0
    %v242 = vand.u32 %v67, 4294901760
    %v243 = vsub.f32 %v67, %v242
    %v244 = vand.u32 %v243, 4294901760
    %v245 = vsub.f32 %v243, %v244
    %v246 = vand.u32 %v245, 4294901760
    %247 = vmatpush1.xpose.msra.mxu0 %v246
    %248 = vmatprep.subr.mxu0 0.0
    %v249 = vand.u32 %v68, 4294901760
    %v250 = vsub.f32 %v68, %v249
    %v251 = vand.u32 %v250, 4294901760
    %v252 = vsub.f32 %v250, %v251
    %v253 = vand.u32 %v252, 4294901760
    %254 = vmatpush1.xpose.msra.mxu0 %v253
    %255 = vmatprep.subr.mxu0 0.0
    %v256 = vand.u32 %v69, 4294901760
    %v257 = vsub.f32 %v69, %v256
    %v258 = vand.u32 %v257, 4294901760
    %v259 = vsub.f32 %v257, %v258
    %v260 = vand.u32 %v259, 4294901760
    %261 = vmatpush1.xpose.msra.mxu0 %v260
    %262 = vmatprep.subr.mxu0 0.0
    %v263 = vand.u32 %v70, 4294901760
    %v264 = vsub.f32 %v70, %v263
    %v265 = vand.u32 %v264, 4294901760
    %v266 = vsub.f32 %v264, %v265
    %v267 = vand.u32 %v266, 4294901760
    %268 = vmatpush1.xpose.msra.mxu0 %v267
    %269 = vmatprep.subr.mxu0 0.0
    %270 = vmatpush1.xpose.msra.mxu0 0.0
    %271 = vmatprep.subr.mxu0 0.0
    %272 = vmatpush1.xpose.msra.mxu0 0.0
    %273 = vmatprep.subr.mxu0 0.0
    %274 = vmatpush1.xpose.msra.mxu0 0.0
    %275 = vmatprep.subr.mxu0 0.0
    %276 = vmatpush1.xpose.msra.mxu0 0.0
    %277 = vmatprep.subr.mxu0 0.0
    %278 = vmatpush1.xpose.msra.mxu0 0.0
    %279 = vmatprep.subr.mxu0 0.0
    %280 = vmatpush1.xpose.msra.mxu0 0.0
    %281 = vmatprep.subr.mxu0 0.0
    %282 = vmatpush1.xpose.msra.mxu0 0.0
    %283 = vmatprep.subr.mxu0 0.0
    %284 = vmatpush1.xpose.msra.mxu0 0.0
    %285 = vmatprep.subr.mxu0 0.0
    %286 = vmatpush1.xpose.msra.mxu0 0.0
    %287 = vmatprep.subr.mxu0 0.0
    %288 = vmatpush1.xpose.msra.mxu0 0.0
    %289 = vmatprep.subr.mxu0 0.0
    %290 = vmatpush1.xpose.msra.mxu0 0.0
    %291 = vmatprep.subr.mxu0 0.0
    %292 = vmatpush1.xpose.msra.mxu0 0.0
    %293 = vmatprep.subr.mxu0 0.0
    %294 = vmatpush1.xpose.msra.mxu0 0.0
    %295 = vmatprep.subr.mxu0 0.0
    %296 = vmatpush1.xpose.msra.mxu0 0.0
    %297 = vmatprep.subr.mxu0 0.0
    %298 = vmatpush1.xpose.msra.mxu0 0.0
    %299 = vmatprep.subr.mxu0 0.0
    %300 = vmatpush1.xpose.msra.mxu0 0.0
    %301 = vmatprep.mubr.f32.mxu0 0.0
    %302 = vmatmul.mubr.f32.gmra.mrb[0].mxu0 1.0
    %v303 = vpop.f32.mrb[0].mxu0
    %v304 = vadd.f32 %v154, %v303
    %v305 = vpop.f32.mrb[0].mxu0
    %306 = vdwg.mxu0
    %307 = vmatprep.subr.mxu0 0.0
    %v308 = vand.u32 %v55, 4294901760
    %v309 = vsub.f32 %v55, %v308
    %310 = vmatpush1.xpose.msra.mxu0 %v309
    %311 = vmatprep.subr.mxu0 0.0
    %v312 = vand.u32 %v56, 4294901760
    %v313 = vsub.f32 %v56, %v312
    %314 = vmatpush1.xpose.msra.mxu0 %v313
    %315 = vmatprep.subr.mxu0 0.0
    %v316 = vand.u32 %v57, 4294901760
    %v317 = vsub.f32 %v57, %v316
    %318 = vmatpush1.xpose.msra.mxu0 %v317
    %319 = vmatprep.subr.mxu0 0.0
    %v320 = vand.u32 %v58, 4294901760
    %v321 = vsub.f32 %v58, %v320
    %322 = vmatpush1.xpose.msra.mxu0 %v321
    %323 = vmatprep.subr.mxu0 0.0
    %v324 = vand.u32 %v59, 4294901760
    %v325 = vsub.f32 %v59, %v324
    %326 = vmatpush1.xpose.msra.mxu0 %v325
    %327 = vmatprep.subr.mxu0 0.0
    %v328 = vand.u32 %v60, 4294901760
    %v329 = vsub.f32 %v60, %v328
    %330 = vmatpush1.xpose.msra.mxu0 %v329
    %331 = vmatprep.subr.mxu0 0.0
    %v332 = vand.u32 %v61, 4294901760
    %v333 = vsub.f32 %v61, %v332
    %334 = vmatpush1.xpose.msra.mxu0 %v333
    %335 = vmatprep.subr.mxu0 0.0
    %v336 = vand.u32 %v62, 4294901760
    %v337 = vsub.f32 %v62, %v336
    %338 = vmatpush1.xpose.msra.mxu0 %v337
    %339 = vmatprep.subr.mxu0 0.0
    %v340 = vand.u32 %v63, 4294901760
    %v341 = vsub.f32 %v63, %v340
    %342 = vmatpush1.xpose.msra.mxu0 %v341
    %343 = vmatprep.subr.mxu0 0.0
    %v344 = vand.u32 %v64, 4294901760
    %v345 = vsub.f32 %v64, %v344
    %346 = vmatpush1.xpose.msra.mxu0 %v345
    %347 = vmatprep.subr.mxu0 0.0
    %v348 = vand.u32 %v65, 4294901760
    %v349 = vsub.f32 %v65, %v348
    %350 = vmatpush1.xpose.msra.mxu0 %v349
    %351 = vmatprep.subr.mxu0 0.0
    %v352 = vand.u32 %v66, 4294901760
    %v353 = vsub.f32 %v66, %v352
    %354 = vmatpush1.xpose.msra.mxu0 %v353
    %355 = vmatprep.subr.mxu0 0.0
    %v356 = vand.u32 %v67, 4294901760
    %v357 = vsub.f32 %v67, %v356
    %358 = vmatpush1.xpose.msra.mxu0 %v357
    %359 = vmatprep.subr.mxu0 0.0
    %v360 = vand.u32 %v68, 4294901760
    %v361 = vsub.f32 %v68, %v360
    %362 = vmatpush1.xpose.msra.mxu0 %v361
    %363 = vmatprep.subr.mxu0 0.0
    %v364 = vand.u32 %v69, 4294901760
    %v365 = vsub.f32 %v69, %v364
    %366 = vmatpush1.xpose.msra.mxu0 %v365
    %367 = vmatprep.subr.mxu0 0.0
    %v368 = vand.u32 %v70, 4294901760
    %v369 = vsub.f32 %v70, %v368
    %370 = vmatpush1.xpose.msra.mxu0 %v369
    %371 = vmatprep.subr.mxu0 0.0
    %372 = vmatpush1.xpose.msra.mxu0 0.0
    %373 = vmatprep.subr.mxu0 0.0
    %374 = vmatpush1.xpose.msra.mxu0 0.0
    %375 = vmatprep.subr.mxu0 0.0
    %376 = vmatpush1.xpose.msra.mxu0 0.0
    %377 = vmatprep.subr.mxu0 0.0
    %378 = vmatpush1.xpose.msra.mxu0 0.0
    %379 = vmatprep.subr.mxu0 0.0
    %380 = vmatpush1.xpose.msra.mxu0 0.0
    %381 = vmatprep.subr.mxu0 0.0
    %382 = vmatpush1.xpose.msra.mxu0 0.0
    %383 = vmatprep.subr.mxu0 0.0
    %384 = vmatpush1.xpose.msra.mxu0 0.0
    %385 = vmatprep.subr.mxu0 0.0
    %386 = vmatpush1.xpose.msra.mxu0 0.0
    %387 = vmatprep.subr.mxu0 0.0
    %388 = vmatpush1.xpose.msra.mxu0 0.0
    %389 = vmatprep.subr.mxu0 0.0
    %390 = vmatpush1.xpose.msra.mxu0 0.0
    %391 = vmatprep.subr.mxu0 0.0
    %392 = vmatpush1.xpose.msra.mxu0 0.0
    %393 = vmatprep.subr.mxu0 0.0
    %394 = vmatpush1.xpose.msra.mxu0 0.0
    %395 = vmatprep.subr.mxu0 0.0
    %396 = vmatpush1.xpose.msra.mxu0 0.0
    %397 = vmatprep.subr.mxu0 0.0
    %398 = vmatpush1.xpose.msra.mxu0 0.0
    %399 = vmatprep.subr.mxu0 0.0
    %400 = vmatpush1.xpose.msra.mxu0 0.0
    %401 = vmatprep.subr.mxu0 0.0
    %402 = vmatpush1.xpose.msra.mxu0 0.0
    %403 = vmatprep.mubr.f32.mxu0 0.0
    %404 = vmatmul.mubr.f32.gmra.mrb[0].mxu0 0.0
    %v405 = vpop.f32.mrb[0].mxu0
    %v406 = vadd.f32 %v304, %v405
    %v407 = vpop.f32.mrb[0].mxu0
    %408 = vdwg.mxu0
    %409 = vmatprep.subr.mxu0 0.0
    %v410 = vand.u32 %v55, 4294901760
    %411 = vmatpush1.xpose.msra.mxu0 %v410
    %412 = vmatprep.subr.mxu0 0.0
    %v413 = vand.u32 %v56, 4294901760
    %414 = vmatpush1.xpose.msra.mxu0 %v413
    %415 = vmatprep.subr.mxu0 0.0
    %v416 = vand.u32 %v57, 4294901760
    %417 = vmatpush1.xpose.msra.mxu0 %v416
    %418 = vmatprep.subr.mxu0 0.0
    %v419 = vand.u32 %v58, 4294901760
    %420 = vmatpush1.xpose.msra.mxu0 %v419
    %421 = vmatprep.subr.mxu0 0.0
    %v422 = vand.u32 %v59, 4294901760
    %423 = vmatpush1.xpose.msra.mxu0 %v422
    %424 = vmatprep.subr.mxu0 0.0
    %v425 = vand.u32 %v60, 4294901760
    %426 = vmatpush1.xpose.msra.mxu0 %v425
    %427 = vmatprep.subr.mxu0 0.0
    %v428 = vand.u32 %v61, 4294901760
    %429 = vmatpush1.xpose.msra.mxu0 %v428
    %430 = vmatprep.subr.mxu0 0.0
    %v431 = vand.u32 %v62, 4294901760
    %432 = vmatpush1.xpose.msra.mxu0 %v431
    %433 = vmatprep.subr.mxu0 0.0
    %v434 = vand.u32 %v63, 4294901760
    %435 = vmatpush1.xpose.msra.mxu0 %v434
    %436 = vmatprep.subr.mxu0 0.0
    %v437 = vand.u32 %v64, 4294901760
    %438 = vmatpush1.xpose.msra.mxu0 %v437
    %439 = vmatprep.subr.mxu0 0.0
    %v440 = vand.u32 %v65, 4294901760
    %441 = vmatpush1.xpose.msra.mxu0 %v440
    %442 = vmatprep.subr.mxu0 0.0
    %v443 = vand.u32 %v66, 4294901760
    %444 = vmatpush1.xpose.msra.mxu0 %v443
    %445 = vmatprep.subr.mxu0 0.0
    %v446 = vand.u32 %v67, 4294901760
    %447 = vmatpush1.xpose.msra.mxu0 %v446
    %448 = vmatprep.subr.mxu0 0.0
    %v449 = vand.u32 %v68, 4294901760
    %450 = vmatpush1.xpose.msra.mxu0 %v449
    %451 = vmatprep.subr.mxu0 0.0
    %v452 = vand.u32 %v69, 4294901760
    %453 = vmatpush1.xpose.msra.mxu0 %v452
    %454 = vmatprep.subr.mxu0 0.0
    %v455 = vand.u32 %v70, 4294901760
    %456 = vmatpush1.xpose.msra.mxu0 %v455
    %457 = vmatprep.subr.mxu0 0.0
    %458 = vmatpush1.xpose.msra.mxu0 0.0
    %459 = vmatprep.subr.mxu0 0.0
    %460 = vmatpush1.xpose.msra.mxu0 0.0
    %461 = vmatprep.subr.mxu0 0.0
    %462 = vmatpush1.xpose.msra.mxu0 0.0
    %463 = vmatprep.subr.mxu0 0.0
    %464 = vmatpush1.xpose.msra.mxu0 0.0
    %465 = vmatprep.subr.mxu0 0.0
    %466 = vmatpush1.xpose.msra.mxu0 0.0
    %467 = vmatprep.subr.mxu0 0.0
    %468 = vmatpush1.xpose.msra.mxu0 0.0
    %469 = vmatprep.subr.mxu0 0.0
    %470 = vmatpush1.xpose.msra.mxu0 0.0
    %471 = vmatprep.subr.mxu0 0.0
    %472 = vmatpush1.xpose.msra.mxu0 0.0
    %473 = vmatprep.subr.mxu0 0.0
    %474 = vmatpush1.xpose.msra.mxu0 0.0
    %475 = vmatprep.subr.mxu0 0.0
    %476 = vmatpush1.xpose.msra.mxu0 0.0
    %477 = vmatprep.subr.mxu0 0.0
    %478 = vmatpush1.xpose.msra.mxu0 0.0
    %479 = vmatprep.subr.mxu0 0.0
    %480 = vmatpush1.xpose.msra.mxu0 0.0
    %481 = vmatprep.subr.mxu0 0.0
    %482 = vmatpush1.xpose.msra.mxu0 0.0
    %483 = vmatprep.subr.mxu0 0.0
    %484 = vmatpush1.xpose.msra.mxu0 0.0
    %485 = vmatprep.subr.mxu0 0.0
    %486 = vmatpush1.xpose.msra.mxu0 0.0
    %487 = vmatprep.subr.mxu0 0.0
    %488 = vmatpush1.xpose.msra.mxu0 0.0
    %489 = vmatprep.mubr.f32.mxu0 0.0
    %490 = vmatmul.mubr.f32.gmra.mrb[0].mxu0 0.0
    %v491 = vpop.f32.mrb[0].mxu0
    %v492 = vadd.f32 %v406, %v491
    %v493 = vpop.f32.mrb[0].mxu0
    %494 = vdwg.mxu0
    %495 = vmatprep.subr.mxu0 0.0
    %v496 = vand.u32 %v55, 4294901760
    %v497 = vsub.f32 %v55, %v496
    %v498 = vand.u32 %v497, 4294901760
    %499 = vmatpush1.xpose.msra.mxu0 %v498
    %500 = vmatprep.subr.mxu0 0.0
    %v501 = vand.u32 %v56, 4294901760
    %v502 = vsub.f32 %v56, %v501
    %v503 = vand.u32 %v502, 4294901760
    %504 = vmatpush1.xpose.msra.mxu0 %v503
    %505 = vmatprep.subr.mxu0 0.0
    %v506 = vand.u32 %v57, 4294901760
    %v507 = vsub.f32 %v57, %v506
    %v508 = vand.u32 %v507, 4294901760
    %509 = vmatpush1.xpose.msra.mxu0 %v508
    %510 = vmatprep.subr.mxu0 0.0
    %v511 = vand.u32 %v58, 4294901760
    %v512 = vsub.f32 %v58, %v511
    %v513 = vand.u32 %v512, 4294901760
    %514 = vmatpush1.xpose.msra.mxu0 %v513
    %515 = vmatprep.subr.mxu0 0.0
    %v516 = vand.u32 %v59, 4294901760
    %v517 = vsub.f32 %v59, %v516
    %v518 = vand.u32 %v517, 4294901760
    %519 = vmatpush1.xpose.msra.mxu0 %v518
    %520 = vmatprep.subr.mxu0 0.0
    %v521 = vand.u32 %v60, 4294901760
    %v522 = vsub.f32 %v60, %v521
    %v523 = vand.u32 %v522, 4294901760
    %524 = vmatpush1.xpose.msra.mxu0 %v523
    %525 = vmatprep.subr.mxu0 0.0
    %v526 = vand.u32 %v61, 4294901760
    %v527 = vsub.f32 %v61, %v526
    %v528 = vand.u32 %v527, 4294901760
    %529 = vmatpush1.xpose.msra.mxu0 %v528
    %530 = vmatprep.subr.mxu0 0.0
    %v531 = vand.u32 %v62, 4294901760
    %v532 = vsub.f32 %v62, %v531
    %v533 = vand.u32 %v532, 4294901760
    %534 = vmatpush1.xpose.msra.mxu0 %v533
    %535 = vmatprep.subr.mxu0 0.0
    %v536 = vand.u32 %v63, 4294901760
    %v537 = vsub.f32 %v63, %v536
    %v538 = vand.u32 %v537, 4294901760
    %539 = vmatpush1.xpose.msra.mxu0 %v538
    %540 = vmatprep.subr.mxu0 0.0
    %v541 = vand.u32 %v64, 4294901760
    %v542 = vsub.f32 %v64, %v541
    %v543 = vand.u32 %v542, 4294901760
    %544 = vmatpush1.xpose.msra.mxu0 %v543
    %545 = vmatprep.subr.mxu0 0.0
    %v546 = vand.u32 %v65, 4294901760
    %v547 = vsub.f32 %v65, %v546
    %v548 = vand.u32 %v547, 4294901760
    %549 = vmatpush1.xpose.msra.mxu0 %v548
    %550 = vmatprep.subr.mxu0 0.0
    %v551 = vand.u32 %v66, 4294901760
    %v552 = vsub.f32 %v66, %v551
    %v553 = vand.u32 %v552, 4294901760
    %554 = vmatpush1.xpose.msra.mxu0 %v553
    %555 = vmatprep.subr.mxu0 0.0
    %v556 = vand.u32 %v67, 4294901760
    %v557 = vsub.f32 %v67, %v556
    %v558 = vand.u32 %v557, 4294901760
    %559 = vmatpush1.xpose.msra.mxu0 %v558
    %560 = vmatprep.subr.mxu0 0.0
    %v561 = vand.u32 %v68, 4294901760
    %v562 = vsub.f32 %v68, %v561
    %v563 = vand.u32 %v562, 4294901760
    %564 = vmatpush1.xpose.msra.mxu0 %v563
    %565 = vmatprep.subr.mxu0 0.0
    %v566 = vand.u32 %v69, 4294901760
    %v567 = vsub.f32 %v69, %v566
    %v568 = vand.u32 %v567, 4294901760
    %569 = vmatpush1.xpose.msra.mxu0 %v568
    %570 = vmatprep.subr.mxu0 0.0
    %v571 = vand.u32 %v70, 4294901760
    %v572 = vsub.f32 %v70, %v571
    %v573 = vand.u32 %v572, 4294901760
    %574 = vmatpush1.xpose.msra.mxu0 %v573
    %575 = vmatprep.subr.mxu0 0.0
    %576 = vmatpush1.xpose.msra.mxu0 0.0
    %577 = vmatprep.subr.mxu0 0.0
    %578 = vmatpush1.xpose.msra.mxu0 0.0
    %579 = vmatprep.subr.mxu0 0.0
    %580 = vmatpush1.xpose.msra.mxu0 0.0
    %581 = vmatprep.subr.mxu0 0.0
    %582 = vmatpush1.xpose.msra.mxu0 0.0
    %583 = vmatprep.subr.mxu0 0.0
    %584 = vmatpush1.xpose.msra.mxu0 0.0
    %585 = vmatprep.subr.mxu0 0.0
    %586 = vmatpush1.xpose.msra.mxu0 0.0
    %587 = vmatprep.subr.mxu0 0.0
    %588 = vmatpush1.xpose.msra.mxu0 0.0
    %589 = vmatprep.subr.mxu0 0.0
    %590 = vmatpush1.xpose.msra.mxu0 0.0
    %591 = vmatprep.subr.mxu0 0.0
    %592 = vmatpush1.xpose.msra.mxu0 0.0
    %593 = vmatprep.subr.mxu0 0.0
    %594 = vmatpush1.xpose.msra.mxu0 0.0
    %595 = vmatprep.subr.mxu0 0.0
    %596 = vmatpush1.xpose.msra.mxu0 0.0
    %597 = vmatprep.subr.mxu0 0.0
    %598 = vmatpush1.xpose.msra.mxu0 0.0
    %599 = vmatprep.subr.mxu0 0.0
    %600 = vmatpush1.xpose.msra.mxu0 0.0
    %601 = vmatprep.subr.mxu0 0.0
    %602 = vmatpush1.xpose.msra.mxu0 0.0
    %603 = vmatprep.subr.mxu0 0.0
    %604 = vmatpush1.xpose.msra.mxu0 0.0
    %605 = vmatprep.subr.mxu0 0.0
    %606 = vmatpush1.xpose.msra.mxu0 0.0
    %607 = vmatprep.mubr.f32.mxu0 0.0
    %608 = vmatmul.mubr.f32.gmra.mrb[0].mxu0 1.0
    %v609 = vpop.f32.mrb[0].mxu0
    %v610 = vadd.f32 %v492, %v609
    %v611 = vpop.f32.mrb[0].mxu0
    %612 = vdwg.mxu0
    %613 = vmatprep.subr.mxu0 0.0
    %v614 = vand.u32 %v55, 4294901760
    %615 = vmatpush1.xpose.msra.mxu0 %v614
    %616 = vmatprep.subr.mxu0 0.0
    %v617 = vand.u32 %v56, 4294901760
    %618 = vmatpush1.xpose.msra.mxu0 %v617
    %619 = vmatprep.subr.mxu0 0.0
    %v620 = vand.u32 %v57, 4294901760
    %621 = vmatpush1.xpose.msra.mxu0 %v620
    %622 = vmatprep.subr.mxu0 0.0
    %v623 = vand.u32 %v58, 4294901760
    %624 = vmatpush1.xpose.msra.mxu0 %v623
    %625 = vmatprep.subr.mxu0 0.0
    %v626 = vand.u32 %v59, 4294901760
    %627 = vmatpush1.xpose.msra.mxu0 %v626
    %628 = vmatprep.subr.mxu0 0.0
    %v629 = vand.u32 %v60, 4294901760
    %630 = vmatpush1.xpose.msra.mxu0 %v629
    %631 = vmatprep.subr.mxu0 0.0
    %v632 = vand.u32 %v61, 4294901760
    %633 = vmatpush1.xpose.msra.mxu0 %v632
    %634 = vmatprep.subr.mxu0 0.0
    %v635 = vand.u32 %v62, 4294901760
    %636 = vmatpush1.xpose.msra.mxu0 %v635
    %637 = vmatprep.subr.mxu0 0.0
    %v638 = vand.u32 %v63, 4294901760
    %639 = vmatpush1.xpose.msra.mxu0 %v638
    %640 = vmatprep.subr.mxu0 0.0
    %v641 = vand.u32 %v64, 4294901760
    %642 = vmatpush1.xpose.msra.mxu0 %v641
    %643 = vmatprep.subr.mxu0 0.0
    %v644 = vand.u32 %v65, 4294901760
    %645 = vmatpush1.xpose.msra.mxu0 %v644
    %646 = vmatprep.subr.mxu0 0.0
    %v647 = vand.u32 %v66, 4294901760
    %648 = vmatpush1.xpose.msra.mxu0 %v647
    %649 = vmatprep.subr.mxu0 0.0
    %v650 = vand.u32 %v67, 4294901760
    %651 = vmatpush1.xpose.msra.mxu0 %v650
    %652 = vmatprep.subr.mxu0 0.0
    %v653 = vand.u32 %v68, 4294901760
    %654 = vmatpush1.xpose.msra.mxu0 %v653
    %655 = vmatprep.subr.mxu0 0.0
    %v656 = vand.u32 %v69, 4294901760
    %657 = vmatpush1.xpose.msra.mxu0 %v656
    %658 = vmatprep.subr.mxu0 0.0
    %v659 = vand.u32 %v70, 4294901760
    %660 = vmatpush1.xpose.msra.mxu0 %v659
    %661 = vmatprep.subr.mxu0 0.0
    %662 = vmatpush1.xpose.msra.mxu0 0.0
    %663 = vmatprep.subr.mxu0 0.0
    %664 = vmatpush1.xpose.msra.mxu0 0.0
    %665 = vmatprep.subr.mxu0 0.0
    %666 = vmatpush1.xpose.msra.mxu0 0.0
    %667 = vmatprep.subr.mxu0 0.0
    %668 = vmatpush1.xpose.msra.mxu0 0.0
    %669 = vmatprep.subr.mxu0 0.0
    %670 = vmatpush1.xpose.msra.mxu0 0.0
    %671 = vmatprep.subr.mxu0 0.0
    %672 = vmatpush1.xpose.msra.mxu0 0.0
    %673 = vmatprep.subr.mxu0 0.0
    %674 = vmatpush1.xpose.msra.mxu0 0.0
    %675 = vmatprep.subr.mxu0 0.0
    %676 = vmatpush1.xpose.msra.mxu0 0.0
    %677 = vmatprep.subr.mxu0 0.0
    %678 = vmatpush1.xpose.msra.mxu0 0.0
    %679 = vmatprep.subr.mxu0 0.0
    %680 = vmatpush1.xpose.msra.mxu0 0.0
    %681 = vmatprep.subr.mxu0 0.0
    %682 = vmatpush1.xpose.msra.mxu0 0.0
    %683 = vmatprep.subr.mxu0 0.0
    %684 = vmatpush1.xpose.msra.mxu0 0.0
    %685 = vmatprep.subr.mxu0 0.0
    %686 = vmatpush1.xpose.msra.mxu0 0.0
    %687 = vmatprep.subr.mxu0 0.0
    %688 = vmatpush1.xpose.msra.mxu0 0.0
    %689 = vmatprep.subr.mxu0 0.0
    %690 = vmatpush1.xpose.msra.mxu0 0.0
    %691 = vmatprep.subr.mxu0 0.0
    %692 = vmatpush1.xpose.msra.mxu0 0.0
    %693 = vmatprep.mubr.f32.mxu0 0.0
    %694 = vmatmul.mubr.f32.gmra.mrb[0].mxu0 1.0
    %v695 = vpop.f32.mrb[0].mxu0
    %v696 = vadd.f32 %v610, %v695
    %v697 = vpop.f32.mrb[0].mxu0
    %698 = vdwg.mxu0
    %v699 = vmul.f32 %v23, %v23
    %v700 = vmul.f32 %v24, %v24
    %v701 = vmul.f32 %v25, %v25
    %v702 = vmul.f32 %v26, %v26
    %v703 = vmul.f32 %v27, %v27
    %v704 = vmul.f32 %v28, %v28
    %v705 = vmul.f32 %v29, %v29
    %v706 = vmul.f32 %v30, %v30
    %v707 = vmul.f32 %v31, %v31
    %v708 = vmul.f32 %v32, %v32
    %v709 = vmul.f32 %v33, %v33
    %v710 = vmul.f32 %v34, %v34
    %v711 = vmul.f32 %v35, %v35
    %v712 = vmul.f32 %v36, %v36
    %v713 = vmul.f32 %v37, %v37
    %v714 = vmul.f32 %v38, %v38
    %715 = vmatprep.subr.mxu0 0.0
    %v716 = vand.u32 %v699, 4294901760
    %717 = vmatpush1.xpose.msra.mxu0 %v716
    %718 = vmatprep.subr.mxu0 0.0
    %v719 = vand.u32 %v700, 4294901760
    %720 = vmatpush1.xpose.msra.mxu0 %v719
    %721 = vmatprep.subr.mxu0 0.0
    %v722 = vand.u32 %v701, 4294901760
    %723 = vmatpush1.xpose.msra.mxu0 %v722
    %724 = vmatprep.subr.mxu0 0.0
    %v725 = vand.u32 %v702, 4294901760
    %726 = vmatpush1.xpose.msra.mxu0 %v725
    %727 = vmatprep.subr.mxu0 0.0
    %v728 = vand.u32 %v703, 4294901760
    %729 = vmatpush1.xpose.msra.mxu0 %v728
    %730 = vmatprep.subr.mxu0 0.0
    %v731 = vand.u32 %v704, 4294901760
    %732 = vmatpush1.xpose.msra.mxu0 %v731
    %733 = vmatprep.subr.mxu0 0.0
    %v734 = vand.u32 %v705, 4294901760
    %735 = vmatpush1.xpose.msra.mxu0 %v734
    %736 = vmatprep.subr.mxu0 0.0
    %v737 = vand.u32 %v706, 4294901760
    %738 = vmatpush1.xpose.msra.mxu0 %v737
    %739 = vmatprep.subr.mxu0 0.0
    %v740 = vand.u32 %v707, 4294901760
    %741 = vmatpush1.xpose.msra.mxu0 %v740
    %742 = vmatprep.subr.mxu0 0.0
    %v743 = vand.u32 %v708, 4294901760
    %744 = vmatpush1.xpose.msra.mxu0 %v743
    %745 = vmatprep.subr.mxu0 0.0
    %v746 = vand.u32 %v709, 4294901760
    %747 = vmatpush1.xpose.msra.mxu0 %v746
    %748 = vmatprep.subr.mxu0 0.0
    %v749 = vand.u32 %v710, 4294901760
    %750 = vmatpush1.xpose.msra.mxu0 %v749
    %751 = vmatprep.subr.mxu0 0.0
    %v752 = vand.u32 %v711, 4294901760
    %753 = vmatpush1.xpose.msra.mxu0 %v752
    %754 = vmatprep.subr.mxu0 0.0
    %v755 = vand.u32 %v712, 4294901760
    %756 = vmatpush1.xpose.msra.mxu0 %v755
    %757 = vmatprep.subr.mxu0 0.0
    %v758 = vand.u32 %v713, 4294901760
    %759 = vmatpush1.xpose.msra.mxu0 %v758
    %760 = vmatprep.subr.mxu0 0.0
    %v761 = vand.u32 %v714, 4294901760
    %762 = vmatpush1.xpose.msra.mxu0 %v761
    %763 = vmatprep.subr.mxu0 0.0
    %764 = vmatpush1.xpose.msra.mxu0 0.0
    %765 = vmatprep.subr.mxu0 0.0
    %766 = vmatpush1.xpose.msra.mxu0 0.0
    %767 = vmatprep.subr.mxu0 0.0
    %768 = vmatpush1.xpose.msra.mxu0 0.0
    %769 = vmatprep.subr.mxu0 0.0
    %770 = vmatpush1.xpose.msra.mxu0 0.0
    %771 = vmatprep.subr.mxu0 0.0
    %772 = vmatpush1.xpose.msra.mxu0 0.0
    %773 = vmatprep.subr.mxu0 0.0
    %774 = vmatpush1.xpose.msra.mxu0 0.0
    %775 = vmatprep.subr.mxu0 0.0
    %776 = vmatpush1.xpose.msra.mxu0 0.0
    %777 = vmatprep.subr.mxu0 0.0
    %778 = vmatpush1.xpose.msra.mxu0 0.0
    %779 = vmatprep.subr.mxu0 0.0
    %780 = vmatpush1.xpose.msra.mxu0 0.0
    %781 = vmatprep.subr.mxu0 0.0
    %782 = vmatpush1.xpose.msra.mxu0 0.0
    %783 = vmatprep.subr.mxu0 0.0
    %784 = vmatpush1.xpose.msra.mxu0 0.0
    %785 = vmatprep.subr.mxu0 0.0
    %786 = vmatpush1.xpose.msra.mxu0 0.0
    %787 = vmatprep.subr.mxu0 0.0
    %788 = vmatpush1.xpose.msra.mxu0 0.0
    %789 = vmatprep.subr.mxu0 0.0
    %790 = vmatpush1.xpose.msra.mxu0 0.0
    %791 = vmatprep.subr.mxu0 0.0
    %792 = vmatpush1.xpose.msra.mxu0 0.0
    %793 = vmatprep.subr.mxu0 0.0
    %794 = vmatpush1.xpose.msra.mxu0 0.0
    %795 = vmatprep.mubr.f32.mxu0 0.0
    %796 = vmatmul.mubr.f32.gmra.mrb[0].mxu0 0.0
    %v797 = vpop.f32.mrb[0].mxu0
    %v798 = vadd.f32 0.0, %v797
    %v799 = vpop.f32.mrb[0].mxu0
    %800 = vdwg.mxu0
    %801 = vmatprep.subr.mxu0 0.0
    %v802 = vand.u32 %v699, 4294901760
    %v803 = vsub.f32 %v699, %v802
    %v804 = vand.u32 %v803, 4294901760
    %v805 = vsub.f32 %v803, %v804
    %v806 = vand.u32 %v805, 4294901760
    %807 = vmatpush1.xpose.msra.mxu0 %v806
    %808 = vmatprep.subr.mxu0 0.0
    %v809 = vand.u32 %v700, 4294901760
    %v810 = vsub.f32 %v700, %v809
    %v811 = vand.u32 %v810, 4294901760
    %v812 = vsub.f32 %v810, %v811
    %v813 = vand.u32 %v812, 4294901760
    %814 = vmatpush1.xpose.msra.mxu0 %v813
    %815 = vmatprep.subr.mxu0 0.0
    %v816 = vand.u32 %v701, 4294901760
    %v817 = vsub.f32 %v701, %v816
    %v818 = vand.u32 %v817, 4294901760
    %v819 = vsub.f32 %v817, %v818
    %v820 = vand.u32 %v819, 4294901760
    %821 = vmatpush1.xpose.msra.mxu0 %v820
    %822 = vmatprep.subr.mxu0 0.0
    %v823 = vand.u32 %v702, 4294901760
    %v824 = vsub.f32 %v702, %v823
    %v825 = vand.u32 %v824, 4294901760
    %v826 = vsub.f32 %v824, %v825
    %v827 = vand.u32 %v826, 4294901760
    %828 = vmatpush1.xpose.msra.mxu0 %v827
    %829 = vmatprep.subr.mxu0 0.0
    %v830 = vand.u32 %v703, 4294901760
    %v831 = vsub.f32 %v703, %v830
    %v832 = vand.u32 %v831, 4294901760
    %v833 = vsub.f32 %v831, %v832
    %v834 = vand.u32 %v833, 4294901760
    %835 = vmatpush1.xpose.msra.mxu0 %v834
    %836 = vmatprep.subr.mxu0 0.0
    %v837 = vand.u32 %v704, 4294901760
    %v838 = vsub.f32 %v704, %v837
    %v839 = vand.u32 %v838, 4294901760
    %v840 = vsub.f32 %v838, %v839
    %v841 = vand.u32 %v840, 4294901760
    %842 = vmatpush1.xpose.msra.mxu0 %v841
    %843 = vmatprep.subr.mxu0 0.0
    %v844 = vand.u32 %v705, 4294901760
    %v845 = vsub.f32 %v705, %v844
    %v846 = vand.u32 %v845, 4294901760
    %v847 = vsub.f32 %v845, %v846
    %v848 = vand.u32 %v847, 4294901760
    %849 = vmatpush1.xpose.msra.mxu0 %v848
    %850 = vmatprep.subr.mxu0 0.0
    %v851 = vand.u32 %v706, 4294901760
    %v852 = vsub.f32 %v706, %v851
    %v853 = vand.u32 %v852, 4294901760
    %v854 = vsub.f32 %v852, %v853
    %v855 = vand.u32 %v854, 4294901760
    %856 = vmatpush1.xpose.msra.mxu0 %v855
    %857 = vmatprep.subr.mxu0 0.0
    %v858 = vand.u32 %v707, 4294901760
    %v859 = vsub.f32 %v707, %v858
    %v860 = vand.u32 %v859, 4294901760
    %v861 = vsub.f32 %v859, %v860
    %v862 = vand.u32 %v861, 4294901760
    %863 = vmatpush1.xpose.msra.mxu0 %v862
    %864 = vmatprep.subr.mxu0 0.0
    %v865 = vand.u32 %v708, 4294901760
    %v866 = vsub.f32 %v708, %v865
    %v867 = vand.u32 %v866, 4294901760
    %v868 = vsub.f32 %v866, %v867
    %v869 = vand.u32 %v868, 4294901760
    %870 = vmatpush1.xpose.msra.mxu0 %v869
    %871 = vmatprep.subr.mxu0 0.0
    %v872 = vand.u32 %v709, 4294901760
    %v873 = vsub.f32 %v709, %v872
    %v874 = vand.u32 %v873, 4294901760
    %v875 = vsub.f32 %v873, %v874
    %v876 = vand.u32 %v875, 4294901760
    %877 = vmatpush1.xpose.msra.mxu0 %v876
    %878 = vmatprep.subr.mxu0 0.0
    %v879 = vand.u32 %v710, 4294901760
    %v880 = vsub.f32 %v710, %v879
    %v881 = vand.u32 %v880, 4294901760
    %v882 = vsub.f32 %v880, %v881
    %v883 = vand.u32 %v882, 4294901760
    %884 = vmatpush1.xpose.msra.mxu0 %v883
    %885 = vmatprep.subr.mxu0 0.0
    %v886 = vand.u32 %v711, 4294901760
    %v887 = vsub.f32 %v711, %v886
    %v888 = vand.u32 %v887, 4294901760
    %v889 = vsub.f32 %v887, %v888
    %v890 = vand.u32 %v889, 4294901760
    %891 = vmatpush1.xpose.msra.mxu0 %v890
    %892 = vmatprep.subr.mxu0 0.0
    %v893 = vand.u32 %v712, 4294901760
    %v894 = vsub.f32 %v712, %v893
    %v895 = vand.u32 %v894, 4294901760
    %v896 = vsub.f32 %v894, %v895
    %v897 = vand.u32 %v896, 4294901760
    %898 = vmatpush1.xpose.msra.mxu0 %v897
    %899 = vmatprep.subr.mxu0 0.0
    %v900 = vand.u32 %v713, 4294901760
    %v901 = vsub.f32 %v713, %v900
    %v902 = vand.u32 %v901, 4294901760
    %v903 = vsub.f32 %v901, %v902
    %v904 = vand.u32 %v903, 4294901760
    %905 = vmatpush1.xpose.msra.mxu0 %v904
    %906 = vmatprep.subr.mxu0 0.0
    %v907 = vand.u32 %v714, 4294901760
    %v908 = vsub.f32 %v714, %v907
    %v909 = vand.u32 %v908, 4294901760
    %v910 = vsub.f32 %v908, %v909
    %v911 = vand.u32 %v910, 4294901760
    %912 = vmatpush1.xpose.msra.mxu0 %v911
    %913 = vmatprep.subr.mxu0 0.0
    %914 = vmatpush1.xpose.msra.mxu0 0.0
    %915 = vmatprep.subr.mxu0 0.0
    %916 = vmatpush1.xpose.msra.mxu0 0.0
    %917 = vmatprep.subr.mxu0 0.0
    %918 = vmatpush1.xpose.msra.mxu0 0.0
    %919 = vmatprep.subr.mxu0 0.0
    %920 = vmatpush1.xpose.msra.mxu0 0.0
    %921 = vmatprep.subr.mxu0 0.0
    %922 = vmatpush1.xpose.msra.mxu0 0.0
    %923 = vmatprep.subr.mxu0 0.0
    %924 = vmatpush1.xpose.msra.mxu0 0.0
    %925 = vmatprep.subr.mxu0 0.0
    %926 = vmatpush1.xpose.msra.mxu0 0.0
    %927 = vmatprep.subr.mxu0 0.0
    %928 = vmatpush1.xpose.msra.mxu0 0.0
    %929 = vmatprep.subr.mxu0 0.0
    %930 = vmatpush1.xpose.msra.mxu0 0.0
    %931 = vmatprep.subr.mxu0 0.0
    %932 = vmatpush1.xpose.msra.mxu0 0.0
    %933 = vmatprep.subr.mxu0 0.0
    %934 = vmatpush1.xpose.msra.mxu0 0.0
    %935 = vmatprep.subr.mxu0 0.0
    %936 = vmatpush1.xpose.msra.mxu0 0.0
    %937 = vmatprep.subr.mxu0 0.0
    %938 = vmatpush1.xpose.msra.mxu0 0.0
    %939 = vmatprep.subr.mxu0 0.0
    %940 = vmatpush1.xpose.msra.mxu0 0.0
    %941 = vmatprep.subr.mxu0 0.0
    %942 = vmatpush1.xpose.msra.mxu0 0.0
    %943 = vmatprep.subr.mxu0 0.0
    %944 = vmatpush1.xpose.msra.mxu0 0.0
    %945 = vmatprep.mubr.f32.mxu0 0.0
    %946 = vmatmul.mubr.f32.gmra.mrb[0].mxu0 1.0
    %v947 = vpop.f32.mrb[0].mxu0
    %v948 = vadd.f32 %v798, %v947
    %v949 = vpop.f32.mrb[0].mxu0
    %950 = vdwg.mxu0
    %951 = vmatprep.subr.mxu0 0.0
    %v952 = vand.u32 %v699, 4294901760
    %v953 = vsub.f32 %v699, %v952
    %954 = vmatpush1.xpose.msra.mxu0 %v953
    %955 = vmatprep.subr.mxu0 0.0
    %v956 = vand.u32 %v700, 4294901760
    %v957 = vsub.f32 %v700, %v956
    %958 = vmatpush1.xpose.msra.mxu0 %v957
    %959 = vmatprep.subr.mxu0 0.0
    %v960 = vand.u32 %v701, 4294901760
    %v961 = vsub.f32 %v701, %v960
    %962 = vmatpush1.xpose.msra.mxu0 %v961
    %963 = vmatprep.subr.mxu0 0.0
    %v964 = vand.u32 %v702, 4294901760
    %v965 = vsub.f32 %v702, %v964
    %966 = vmatpush1.xpose.msra.mxu0 %v965
    %967 = vmatprep.subr.mxu0 0.0
    %v968 = vand.u32 %v703, 4294901760
    %v969 = vsub.f32 %v703, %v968
    %970 = vmatpush1.xpose.msra.mxu0 %v969
    %971 = vmatprep.subr.mxu0 0.0
    %v972 = vand.u32 %v704, 4294901760
    %v973 = vsub.f32 %v704, %v972
    %974 = vmatpush1.xpose.msra.mxu0 %v973
    %975 = vmatprep.subr.mxu0 0.0
    %v976 = vand.u32 %v705, 4294901760
    %v977 = vsub.f32 %v705, %v976
    %978 = vmatpush1.xpose.msra.mxu0 %v977
    %979 = vmatprep.subr.mxu0 0.0
    %v980 = vand.u32 %v706, 4294901760
    %v981 = vsub.f32 %v706, %v980
    %982 = vmatpush1.xpose.msra.mxu0 %v981
    %983 = vmatprep.subr.mxu0 0.0
    %v984 = vand.u32 %v707, 4294901760
    %v985 = vsub.f32 %v707, %v984
    %986 = vmatpush1.xpose.msra.mxu0 %v985
    %987 = vmatprep.subr.mxu0 0.0
    %v988 = vand.u32 %v708, 4294901760
    %v989 = vsub.f32 %v708, %v988
    %990 = vmatpush1.xpose.msra.mxu0 %v989
    %991 = vmatprep.subr.mxu0 0.0
    %v992 = vand.u32 %v709, 4294901760
    %v993 = vsub.f32 %v709, %v992
    %994 = vmatpush1.xpose.msra.mxu0 %v993
    %995 = vmatprep.subr.mxu0 0.0
    %v996 = vand.u32 %v710, 4294901760
    %v997 = vsub.f32 %v710, %v996
    %998 = vmatpush1.xpose.msra.mxu0 %v997
    %999 = vmatprep.subr.mxu0 0.0
    %v1000 = vand.u32 %v711, 4294901760
    %v1001 = vsub.f32 %v711, %v1000
    %1002 = vmatpush1.xpose.msra.mxu0 %v1001
    %1003 = vmatprep.subr.mxu0 0.0
    %v1004 = vand.u32 %v712, 4294901760
    %v1005 = vsub.f32 %v712, %v1004
    %1006 = vmatpush1.xpose.msra.mxu0 %v1005
    %1007 = vmatprep.subr.mxu0 0.0
    %v1008 = vand.u32 %v713, 4294901760
    %v1009 = vsub.f32 %v713, %v1008
    %1010 = vmatpush1.xpose.msra.mxu0 %v1009
    %1011 = vmatprep.subr.mxu0 0.0
    %v1012 = vand.u32 %v714, 4294901760
    %v1013 = vsub.f32 %v714, %v1012
    %1014 = vmatpush1.xpose.msra.mxu0 %v1013
    %1015 = vmatprep.subr.mxu0 0.0
    %1016 = vmatpush1.xpose.msra.mxu0 0.0
    %1017 = vmatprep.subr.mxu0 0.0
    %1018 = vmatpush1.xpose.msra.mxu0 0.0
    %1019 = vmatprep.subr.mxu0 0.0
    %1020 = vmatpush1.xpose.msra.mxu0 0.0
    %1021 = vmatprep.subr.mxu0 0.0
    %1022 = vmatpush1.xpose.msra.mxu0 0.0
    %1023 = vmatprep.subr.mxu0 0.0
    %1024 = vmatpush1.xpose.msra.mxu0 0.0
    %1025 = vmatprep.subr.mxu0 0.0
    %1026 = vmatpush1.xpose.msra.mxu0 0.0
    %1027 = vmatprep.subr.mxu0 0.0
    %1028 = vmatpush1.xpose.msra.mxu0 0.0
    %1029 = vmatprep.subr.mxu0 0.0
    %1030 = vmatpush1.xpose.msra.mxu0 0.0
    %1031 = vmatprep.subr.mxu0 0.0
    %1032 = vmatpush1.xpose.msra.mxu0 0.0
    %1033 = vmatprep.subr.mxu0 0.0
    %1034 = vmatpush1.xpose.msra.mxu0 0.0
    %1035 = vmatprep.subr.mxu0 0.0
    %1036 = vmatpush1.xpose.msra.mxu0 0.0
    %1037 = vmatprep.subr.mxu0 0.0
    %1038 = vmatpush1.xpose.msra.mxu0 0.0
    %1039 = vmatprep.subr.mxu0 0.0
    %1040 = vmatpush1.xpose.msra.mxu0 0.0
    %1041 = vmatprep.subr.mxu0 0.0
    %1042 = vmatpush1.xpose.msra.mxu0 0.0
    %1043 = vmatprep.subr.mxu0 0.0
    %1044 = vmatpush1.xpose.msra.mxu0 0.0
    %1045 = vmatprep.subr.mxu0 0.0
    %1046 = vmatpush1.xpose.msra.mxu0 0.0
    %1047 = vmatprep.mubr.f32.mxu0 0.0
    %1048 = vmatmul.mubr.f32.gmra.mrb[0].mxu0 0.0
    %v1049 = vpop.f32.mrb[0].mxu0
    %v1050 = vadd.f32 %v948, %v1049
    %v1051 = vpop.f32.mrb[0].mxu0
    %1052 = vdwg.mxu0
    %1053 = vmatprep.subr.mxu0 0.0
    %v1054 = vand.u32 %v699, 4294901760
    %1055 = vmatpush1.xpose.msra.mxu0 %v1054
    %1056 = vmatprep.subr.mxu0 0.0
    %v1057 = vand.u32 %v700, 4294901760
    %1058 = vmatpush1.xpose.msra.mxu0 %v1057
    %1059 = vmatprep.subr.mxu0 0.0
    %v1060 = vand.u32 %v701, 4294901760
    %1061 = vmatpush1.xpose.msra.mxu0 %v1060
    %1062 = vmatprep.subr.mxu0 0.0
    %v1063 = vand.u32 %v702, 4294901760
    %1064 = vmatpush1.xpose.msra.mxu0 %v1063
    %1065 = vmatprep.subr.mxu0 0.0
    %v1066 = vand.u32 %v703, 4294901760
    %1067 = vmatpush1.xpose.msra.mxu0 %v1066
    %1068 = vmatprep.subr.mxu0 0.0
    %v1069 = vand.u32 %v704, 4294901760
    %1070 = vmatpush1.xpose.msra.mxu0 %v1069
    %1071 = vmatprep.subr.mxu0 0.0
    %v1072 = vand.u32 %v705, 4294901760
    %1073 = vmatpush1.xpose.msra.mxu0 %v1072
    %1074 = vmatprep.subr.mxu0 0.0
    %v1075 = vand.u32 %v706, 4294901760
    %1076 = vmatpush1.xpose.msra.mxu0 %v1075
    %1077 = vmatprep.subr.mxu0 0.0
    %v1078 = vand.u32 %v707, 4294901760
    %1079 = vmatpush1.xpose.msra.mxu0 %v1078
    %1080 = vmatprep.subr.mxu0 0.0
    %v1081 = vand.u32 %v708, 4294901760
    %1082 = vmatpush1.xpose.msra.mxu0 %v1081
    %1083 = vmatprep.subr.mxu0 0.0
    %v1084 = vand.u32 %v709, 4294901760
    %1085 = vmatpush1.xpose.msra.mxu0 %v1084
    %1086 = vmatprep.subr.mxu0 0.0
    %v1087 = vand.u32 %v710, 4294901760
    %1088 = vmatpush1.xpose.msra.mxu0 %v1087
    %1089 = vmatprep.subr.mxu0 0.0
    %v1090 = vand.u32 %v711, 4294901760
    %1091 = vmatpush1.xpose.msra.mxu0 %v1090
    %1092 = vmatprep.subr.mxu0 0.0
    %v1093 = vand.u32 %v712, 4294901760
    %1094 = vmatpush1.xpose.msra.mxu0 %v1093
    %1095 = vmatprep.subr.mxu0 0.0
    %v1096 = vand.u32 %v713, 4294901760
    %1097 = vmatpush1.xpose.msra.mxu0 %v1096
    %1098 = vmatprep.subr.mxu0 0.0
    %v1099 = vand.u32 %v714, 4294901760
    %1100 = vmatpush1.xpose.msra.mxu0 %v1099
    %1101 = vmatprep.subr.mxu0 0.0
    %1102 = vmatpush1.xpose.msra.mxu0 0.0
    %1103 = vmatprep.subr.mxu0 0.0
    %1104 = vmatpush1.xpose.msra.mxu0 0.0
    %1105 = vmatprep.subr.mxu0 0.0
    %1106 = vmatpush1.xpose.msra.mxu0 0.0
    %1107 = vmatprep.subr.mxu0 0.0
    %1108 = vmatpush1.xpose.msra.mxu0 0.0
    %1109 = vmatprep.subr.mxu0 0.0
    %1110 = vmatpush1.xpose.msra.mxu0 0.0
    %1111 = vmatprep.subr.mxu0 0.0
    %1112 = vmatpush1.xpose.msra.mxu0 0.0
    %1113 = vmatprep.subr.mxu0 0.0
    %1114 = vmatpush1.xpose.msra.mxu0 0.0
    %1115 = vmatprep.subr.mxu0 0.0
    %1116 = vmatpush1.xpose.msra.mxu0 0.0
    %1117 = vmatprep.subr.mxu0 0.0
    %1118 = vmatpush1.xpose.msra.mxu0 0.0
    %1119 = vmatprep.subr.mxu0 0.0
    %1120 = vmatpush1.xpose.msra.mxu0 0.0
    %1121 = vmatprep.subr.mxu0 0.0
    %1122 = vmatpush1.xpose.msra.mxu0 0.0
    %1123 = vmatprep.subr.mxu0 0.0
    %1124 = vmatpush1.xpose.msra.mxu0 0.0
    %1125 = vmatprep.subr.mxu0 0.0
    %1126 = vmatpush1.xpose.msra.mxu0 0.0
    %1127 = vmatprep.subr.mxu0 0.0
    %1128 = vmatpush1.xpose.msra.mxu0 0.0
    %1129 = vmatprep.subr.mxu0 0.0
    %1130 = vmatpush1.xpose.msra.mxu0 0.0
    %1131 = vmatprep.subr.mxu0 0.0
    %1132 = vmatpush1.xpose.msra.mxu0 0.0
    %1133 = vmatprep.mubr.f32.mxu0 0.0
    %1134 = vmatmul.mubr.f32.gmra.mrb[0].mxu0 0.0
    %v1135 = vpop.f32.mrb[0].mxu0
    %v1136 = vadd.f32 %v1050, %v1135
    %v1137 = vpop.f32.mrb[0].mxu0
    %1138 = vdwg.mxu0
    %1139 = vmatprep.subr.mxu0 0.0
    %v1140 = vand.u32 %v699, 4294901760
    %v1141 = vsub.f32 %v699, %v1140
    %v1142 = vand.u32 %v1141, 4294901760
    %1143 = vmatpush1.xpose.msra.mxu0 %v1142
    %1144 = vmatprep.subr.mxu0 0.0
    %v1145 = vand.u32 %v700, 4294901760
    %v1146 = vsub.f32 %v700, %v1145
    %v1147 = vand.u32 %v1146, 4294901760
    %1148 = vmatpush1.xpose.msra.mxu0 %v1147
    %1149 = vmatprep.subr.mxu0 0.0
    %v1150 = vand.u32 %v701, 4294901760
    %v1151 = vsub.f32 %v701, %v1150
    %v1152 = vand.u32 %v1151, 4294901760
    %1153 = vmatpush1.xpose.msra.mxu0 %v1152
    %1154 = vmatprep.subr.mxu0 0.0
    %v1155 = vand.u32 %v702, 4294901760
    %v1156 = vsub.f32 %v702, %v1155
    %v1157 = vand.u32 %v1156, 4294901760
    %1158 = vmatpush1.xpose.msra.mxu0 %v1157
    %1159 = vmatprep.subr.mxu0 0.0
    %v1160 = vand.u32 %v703, 4294901760
    %v1161 = vsub.f32 %v703, %v1160
    %v1162 = vand.u32 %v1161, 4294901760
    %1163 = vmatpush1.xpose.msra.mxu0 %v1162
    %1164 = vmatprep.subr.mxu0 0.0
    %v1165 = vand.u32 %v704, 4294901760
    %v1166 = vsub.f32 %v704, %v1165
    %v1167 = vand.u32 %v1166, 4294901760
    %1168 = vmatpush1.xpose.msra.mxu0 %v1167
    %1169 = vmatprep.subr.mxu0 0.0
    %v1170 = vand.u32 %v705, 4294901760
    %v1171 = vsub.f32 %v705, %v1170
    %v1172 = vand.u32 %v1171, 4294901760
    %1173 = vmatpush1.xpose.msra.mxu0 %v1172
    %1174 = vmatprep.subr.mxu0 0.0
    %v1175 = vand.u32 %v706, 4294901760
    %v1176 = vsub.f32 %v706, %v1175
    %v1177 = vand.u32 %v1176, 4294901760
    %1178 = vmatpush1.xpose.msra.mxu0 %v1177
    %1179 = vmatprep.subr.mxu0 0.0
    %v1180 = vand.u32 %v707, 4294901760
    %v1181 = vsub.f32 %v707, %v1180
    %v1182 = vand.u32 %v1181, 4294901760
    %1183 = vmatpush1.xpose.msra.mxu0 %v1182
    %1184 = vmatprep.subr.mxu0 0.0
    %v1185 = vand.u32 %v708, 4294901760
    %v1186 = vsub.f32 %v708, %v1185
    %v1187 = vand.u32 %v1186, 4294901760
    %1188 = vmatpush1.xpose.msra.mxu0 %v1187
    %1189 = vmatprep.subr.mxu0 0.0
    %v1190 = vand.u32 %v709, 4294901760
    %v1191 = vsub.f32 %v709, %v1190
    %v1192 = vand.u32 %v1191, 4294901760
    %1193 = vmatpush1.xpose.msra.mxu0 %v1192
    %1194 = vmatprep.subr.mxu0 0.0
    %v1195 = vand.u32 %v710, 4294901760
    %v1196 = vsub.f32 %v710, %v1195
    %v1197 = vand.u32 %v1196, 4294901760
    %1198 = vmatpush1.xpose.msra.mxu0 %v1197
    %1199 = vmatprep.subr.mxu0 0.0
    %v1200 = vand.u32 %v711, 4294901760
    %v1201 = vsub.f32 %v711, %v1200
    %v1202 = vand.u32 %v1201, 4294901760
    %1203 = vmatpush1.xpose.msra.mxu0 %v1202
    %1204 = vmatprep.subr.mxu0 0.0
    %v1205 = vand.u32 %v712, 4294901760
    %v1206 = vsub.f32 %v712, %v1205
    %v1207 = vand.u32 %v1206, 4294901760
    %1208 = vmatpush1.xpose.msra.mxu0 %v1207
    %1209 = vmatprep.subr.mxu0 0.0
    %v1210 = vand.u32 %v713, 4294901760
    %v1211 = vsub.f32 %v713, %v1210
    %v1212 = vand.u32 %v1211, 4294901760
    %1213 = vmatpush1.xpose.msra.mxu0 %v1212
    %1214 = vmatprep.subr.mxu0 0.0
    %v1215 = vand.u32 %v714, 4294901760
    %v1216 = vsub.f32 %v714, %v1215
    %v1217 = vand.u32 %v1216, 4294901760
    %1218 = vmatpush1.xpose.msra.mxu0 %v1217
    %1219 = vmatprep.subr.mxu0 0.0
    %1220 = vmatpush1.xpose.msra.mxu0 0.0
    %1221 = vmatprep.subr.mxu0 0.0
    %1222 = vmatpush1.xpose.msra.mxu0 0.0
    %1223 = vmatprep.subr.mxu0 0.0
    %1224 = vmatpush1.xpose.msra.mxu0 0.0
    %1225 = vmatprep.subr.mxu0 0.0
    %1226 = vmatpush1.xpose.msra.mxu0 0.0
    %1227 = vmatprep.subr.mxu0 0.0
    %1228 = vmatpush1.xpose.msra.mxu0 0.0
    %1229 = vmatprep.subr.mxu0 0.0
    %1230 = vmatpush1.xpose.msra.mxu0 0.0
    %1231 = vmatprep.subr.mxu0 0.0
    %1232 = vmatpush1.xpose.msra.mxu0 0.0
    %1233 = vmatprep.subr.mxu0 0.0
    %1234 = vmatpush1.xpose.msra.mxu0 0.0
    %1235 = vmatprep.subr.mxu0 0.0
    %1236 = vmatpush1.xpose.msra.mxu0 0.0
    %1237 = vmatprep.subr.mxu0 0.0
    %1238 = vmatpush1.xpose.msra.mxu0 0.0
    %1239 = vmatprep.subr.mxu0 0.0
    %1240 = vmatpush1.xpose.msra.mxu0 0.0
    %1241 = vmatprep.subr.mxu0 0.0
    %1242 = vmatpush1.xpose.msra.mxu0 0.0
    %1243 = vmatprep.subr.mxu0 0.0
    %1244 = vmatpush1.xpose.msra.mxu0 0.0
    %1245 = vmatprep.subr.mxu0 0.0
    %1246 = vmatpush1.xpose.msra.mxu0 0.0
    %1247 = vmatprep.subr.mxu0 0.0
    %1248 = vmatpush1.xpose.msra.mxu0 0.0
    %1249 = vmatprep.subr.mxu0 0.0
    %1250 = vmatpush1.xpose.msra.mxu0 0.0
    %1251 = vmatprep.mubr.f32.mxu0 0.0
    %1252 = vmatmul.mubr.f32.gmra.mrb[0].mxu0 1.0
    %v1253 = vpop.f32.mrb[0].mxu0
    %v1254 = vadd.f32 %v1136, %v1253
    %v1255 = vpop.f32.mrb[0].mxu0
    %1256 = vdwg.mxu0
    %1257 = vmatprep.subr.mxu0 0.0
    %v1258 = vand.u32 %v699, 4294901760
    %1259 = vmatpush1.xpose.msra.mxu0 %v1258
    %1260 = vmatprep.subr.mxu0 0.0
    %v1261 = vand.u32 %v700, 4294901760
    %1262 = vmatpush1.xpose.msra.mxu0 %v1261
    %1263 = vmatprep.subr.mxu0 0.0
    %v1264 = vand.u32 %v701, 4294901760
    %1265 = vmatpush1.xpose.msra.mxu0 %v1264
    %1266 = vmatprep.subr.mxu0 0.0
    %v1267 = vand.u32 %v702, 4294901760
    %1268 = vmatpush1.xpose.msra.mxu0 %v1267
    %1269 = vmatprep.subr.mxu0 0.0
    %v1270 = vand.u32 %v703, 4294901760
    %1271 = vmatpush1.xpose.msra.mxu0 %v1270
    %1272 = vmatprep.subr.mxu0 0.0
    %v1273 = vand.u32 %v704, 4294901760
    %1274 = vmatpush1.xpose.msra.mxu0 %v1273
    %1275 = vmatprep.subr.mxu0 0.0
    %v1276 = vand.u32 %v705, 4294901760
    %1277 = vmatpush1.xpose.msra.mxu0 %v1276
    %1278 = vmatprep.subr.mxu0 0.0
    %v1279 = vand.u32 %v706, 4294901760
    %1280 = vmatpush1.xpose.msra.mxu0 %v1279
    %1281 = vmatprep.subr.mxu0 0.0
    %v1282 = vand.u32 %v707, 4294901760
    %1283 = vmatpush1.xpose.msra.mxu0 %v1282
    %1284 = vmatprep.subr.mxu0 0.0
    %v1285 = vand.u32 %v708, 4294901760
    %1286 = vmatpush1.xpose.msra.mxu0 %v1285
    %1287 = vmatprep.subr.mxu0 0.0
    %v1288 = vand.u32 %v709, 4294901760
    %1289 = vmatpush1.xpose.msra.mxu0 %v1288
    %1290 = vmatprep.subr.mxu0 0.0
    %v1291 = vand.u32 %v710, 4294901760
    %1292 = vmatpush1.xpose.msra.mxu0 %v1291
    %1293 = vmatprep.subr.mxu0 0.0
    %v1294 = vand.u32 %v711, 4294901760
    %1295 = vmatpush1.xpose.msra.mxu0 %v1294
    %1296 = vmatprep.subr.mxu0 0.0
    %v1297 = vand.u32 %v712, 4294901760
    %1298 = vmatpush1.xpose.msra.mxu0 %v1297
    %1299 = vmatprep.subr.mxu0 0.0
    %v1300 = vand.u32 %v713, 4294901760
    %1301 = vmatpush1.xpose.msra.mxu0 %v1300
    %1302 = vmatprep.subr.mxu0 0.0
    %v1303 = vand.u32 %v714, 4294901760
    %1304 = vmatpush1.xpose.msra.mxu0 %v1303
    %1305 = vmatprep.subr.mxu0 0.0
    %1306 = vmatpush1.xpose.msra.mxu0 0.0
    %1307 = vmatprep.subr.mxu0 0.0
    %1308 = vmatpush1.xpose.msra.mxu0 0.0
    %1309 = vmatprep.subr.mxu0 0.0
    %1310 = vmatpush1.xpose.msra.mxu0 0.0
    %1311 = vmatprep.subr.mxu0 0.0
    %1312 = vmatpush1.xpose.msra.mxu0 0.0
    %1313 = vmatprep.subr.mxu0 0.0
    %1314 = vmatpush1.xpose.msra.mxu0 0.0
    %1315 = vmatprep.subr.mxu0 0.0
    %1316 = vmatpush1.xpose.msra.mxu0 0.0
    %1317 = vmatprep.subr.mxu0 0.0
    %1318 = vmatpush1.xpose.msra.mxu0 0.0
    %1319 = vmatprep.subr.mxu0 0.0
    %1320 = vmatpush1.xpose.msra.mxu0 0.0
    %1321 = vmatprep.subr.mxu0 0.0
    %1322 = vmatpush1.xpose.msra.mxu0 0.0
    %1323 = vmatprep.subr.mxu0 0.0
    %1324 = vmatpush1.xpose.msra.mxu0 0.0
    %1325 = vmatprep.subr.mxu0 0.0
    %1326 = vmatpush1.xpose.msra.mxu0 0.0
    %1327 = vmatprep.subr.mxu0 0.0
    %1328 = vmatpush1.xpose.msra.mxu0 0.0
    %1329 = vmatprep.subr.mxu0 0.0
    %1330 = vmatpush1.xpose.msra.mxu0 0.0
    %1331 = vmatprep.subr.mxu0 0.0
    %1332 = vmatpush1.xpose.msra.mxu0 0.0
    %1333 = vmatprep.subr.mxu0 0.0
    %1334 = vmatpush1.xpose.msra.mxu0 0.0
    %1335 = vmatprep.subr.mxu0 0.0
    %1336 = vmatpush1.xpose.msra.mxu0 0.0
    %1337 = vmatprep.mubr.f32.mxu0 0.0
    %1338 = vmatmul.mubr.f32.gmra.mrb[0].mxu0 1.0
    %v1339 = vpop.f32.mrb[0].mxu0
    %v1340 = vadd.f32 %v1254, %v1339
    %v1341 = vpop.f32.mrb[0].mxu0
    %1342 = vdwg.mxu0
    %v1343 = vmul.f32 %v39, %v39
    %v1344 = vmul.f32 %v40, %v40
    %v1345 = vmul.f32 %v41, %v41
    %v1346 = vmul.f32 %v42, %v42
    %v1347 = vmul.f32 %v43, %v43
    %v1348 = vmul.f32 %v44, %v44
    %v1349 = vmul.f32 %v45, %v45
    %v1350 = vmul.f32 %v46, %v46
    %v1351 = vmul.f32 %v47, %v47
    %v1352 = vmul.f32 %v48, %v48
    %v1353 = vmul.f32 %v49, %v49
    %v1354 = vmul.f32 %v50, %v50
    %v1355 = vmul.f32 %v51, %v51
    %v1356 = vmul.f32 %v52, %v52
    %v1357 = vmul.f32 %v53, %v53
    %v1358 = vmul.f32 %v54, %v54
    %1359 = vmatprep.subr.mxu0 0.0
    %v1360 = vand.u32 %v1343, 4294901760
    %1361 = vmatpush1.xpose.msra.mxu0 %v1360
    %1362 = vmatprep.subr.mxu0 0.0
    %v1363 = vand.u32 %v1344, 4294901760
    %1364 = vmatpush1.xpose.msra.mxu0 %v1363
    %1365 = vmatprep.subr.mxu0 0.0
    %v1366 = vand.u32 %v1345, 4294901760
    %1367 = vmatpush1.xpose.msra.mxu0 %v1366
    %1368 = vmatprep.subr.mxu0 0.0
    %v1369 = vand.u32 %v1346, 4294901760
    %1370 = vmatpush1.xpose.msra.mxu0 %v1369
    %1371 = vmatprep.subr.mxu0 0.0
    %v1372 = vand.u32 %v1347, 4294901760
    %1373 = vmatpush1.xpose.msra.mxu0 %v1372
    %1374 = vmatprep.subr.mxu0 0.0
    %v1375 = vand.u32 %v1348, 4294901760
    %1376 = vmatpush1.xpose.msra.mxu0 %v1375
    %1377 = vmatprep.subr.mxu0 0.0
    %v1378 = vand.u32 %v1349, 4294901760
    %1379 = vmatpush1.xpose.msra.mxu0 %v1378
    %1380 = vmatprep.subr.mxu0 0.0
    %v1381 = vand.u32 %v1350, 4294901760
    %1382 = vmatpush1.xpose.msra.mxu0 %v1381
    %1383 = vmatprep.subr.mxu0 0.0
    %v1384 = vand.u32 %v1351, 4294901760
    %1385 = vmatpush1.xpose.msra.mxu0 %v1384
    %1386 = vmatprep.subr.mxu0 0.0
    %v1387 = vand.u32 %v1352, 4294901760
    %1388 = vmatpush1.xpose.msra.mxu0 %v1387
    %1389 = vmatprep.subr.mxu0 0.0
    %v1390 = vand.u32 %v1353, 4294901760
    %1391 = vmatpush1.xpose.msra.mxu0 %v1390
    %1392 = vmatprep.subr.mxu0 0.0
    %v1393 = vand.u32 %v1354, 4294901760
    %1394 = vmatpush1.xpose.msra.mxu0 %v1393
    %1395 = vmatprep.subr.mxu0 0.0
    %v1396 = vand.u32 %v1355, 4294901760
    %1397 = vmatpush1.xpose.msra.mxu0 %v1396
    %1398 = vmatprep.subr.mxu0 0.0
    %v1399 = vand.u32 %v1356, 4294901760
    %1400 = vmatpush1.xpose.msra.mxu0 %v1399
    %1401 = vmatprep.subr.mxu0 0.0
    %v1402 = vand.u32 %v1357, 4294901760
    %1403 = vmatpush1.xpose.msra.mxu0 %v1402
    %1404 = vmatprep.subr.mxu0 0.0
    %v1405 = vand.u32 %v1358, 4294901760
    %1406 = vmatpush1.xpose.msra.mxu0 %v1405
    %1407 = vmatprep.subr.mxu0 0.0
    %1408 = vmatpush1.xpose.msra.mxu0 0.0
    %1409 = vmatprep.subr.mxu0 0.0
    %1410 = vmatpush1.xpose.msra.mxu0 0.0
    %1411 = vmatprep.subr.mxu0 0.0
    %1412 = vmatpush1.xpose.msra.mxu0 0.0
    %1413 = vmatprep.subr.mxu0 0.0
    %1414 = vmatpush1.xpose.msra.mxu0 0.0
    %1415 = vmatprep.subr.mxu0 0.0
    %1416 = vmatpush1.xpose.msra.mxu0 0.0
    %1417 = vmatprep.subr.mxu0 0.0
    %1418 = vmatpush1.xpose.msra.mxu0 0.0
    %1419 = vmatprep.subr.mxu0 0.0
    %1420 = vmatpush1.xpose.msra.mxu0 0.0
    %1421 = vmatprep.subr.mxu0 0.0
    %1422 = vmatpush1.xpose.msra.mxu0 0.0
    %1423 = vmatprep.subr.mxu0 0.0
    %1424 = vmatpush1.xpose.msra.mxu0 0.0
    %1425 = vmatprep.subr.mxu0 0.0
    %1426 = vmatpush1.xpose.msra.mxu0 0.0
    %1427 = vmatprep.subr.mxu0 0.0
    %1428 = vmatpush1.xpose.msra.mxu0 0.0
    %1429 = vmatprep.subr.mxu0 0.0
    %1430 = vmatpush1.xpose.msra.mxu0 0.0
    %1431 = vmatprep.subr.mxu0 0.0
    %1432 = vmatpush1.xpose.msra.mxu0 0.0
    %1433 = vmatprep.subr.mxu0 0.0
    %1434 = vmatpush1.xpose.msra.mxu0 0.0
    %1435 = vmatprep.subr.mxu0 0.0
    %1436 = vmatpush1.xpose.msra.mxu0 0.0
    %1437 = vmatprep.subr.mxu0 0.0
    %1438 = vmatpush1.xpose.msra.mxu0 0.0
    %1439 = vmatprep.mubr.f32.mxu0 0.0
    %1440 = vmatmul.mubr.f32.gmra.mrb[0].mxu0 0.0
    %v1441 = vpop.f32.mrb[0].mxu0
    %v1442 = vadd.f32 0.0, %v1441
    %v1443 = vpop.f32.mrb[0].mxu0
    %1444 = vdwg.mxu0
    %1445 = vmatprep.subr.mxu0 0.0
    %v1446 = vand.u32 %v1343, 4294901760
    %v1447 = vsub.f32 %v1343, %v1446
    %v1448 = vand.u32 %v1447, 4294901760
    %v1449 = vsub.f32 %v1447, %v1448
    %v1450 = vand.u32 %v1449, 4294901760
    %1451 = vmatpush1.xpose.msra.mxu0 %v1450
    %1452 = vmatprep.subr.mxu0 0.0
    %v1453 = vand.u32 %v1344, 4294901760
    %v1454 = vsub.f32 %v1344, %v1453
    %v1455 = vand.u32 %v1454, 4294901760
    %v1456 = vsub.f32 %v1454, %v1455
    %v1457 = vand.u32 %v1456, 4294901760
    %1458 = vmatpush1.xpose.msra.mxu0 %v1457
    %1459 = vmatprep.subr.mxu0 0.0
    %v1460 = vand.u32 %v1345, 4294901760
    %v1461 = vsub.f32 %v1345, %v1460
    %v1462 = vand.u32 %v1461, 4294901760
    %v1463 = vsub.f32 %v1461, %v1462
    %v1464 = vand.u32 %v1463, 4294901760
    %1465 = vmatpush1.xpose.msra.mxu0 %v1464
    %1466 = vmatprep.subr.mxu0 0.0
    %v1467 = vand.u32 %v1346, 4294901760
    %v1468 = vsub.f32 %v1346, %v1467
    %v1469 = vand.u32 %v1468, 4294901760
    %v1470 = vsub.f32 %v1468, %v1469
    %v1471 = vand.u32 %v1470, 4294901760
    %1472 = vmatpush1.xpose.msra.mxu0 %v1471
    %1473 = vmatprep.subr.mxu0 0.0
    %v1474 = vand.u32 %v1347, 4294901760
    %v1475 = vsub.f32 %v1347, %v1474
    %v1476 = vand.u32 %v1475, 4294901760
    %v1477 = vsub.f32 %v1475, %v1476
    %v1478 = vand.u32 %v1477, 4294901760
    %1479 = vmatpush1.xpose.msra.mxu0 %v1478
    %1480 = vmatprep.subr.mxu0 0.0
    %v1481 = vand.u32 %v1348, 4294901760
    %v1482 = vsub.f32 %v1348, %v1481
    %v1483 = vand.u32 %v1482, 4294901760
    %v1484 = vsub.f32 %v1482, %v1483
    %v1485 = vand.u32 %v1484, 4294901760
    %1486 = vmatpush1.xpose.msra.mxu0 %v1485
    %1487 = vmatprep.subr.mxu0 0.0
    %v1488 = vand.u32 %v1349, 4294901760
    %v1489 = vsub.f32 %v1349, %v1488
    %v1490 = vand.u32 %v1489, 4294901760
    %v1491 = vsub.f32 %v1489, %v1490
    %v1492 = vand.u32 %v1491, 4294901760
    %1493 = vmatpush1.xpose.msra.mxu0 %v1492
    %1494 = vmatprep.subr.mxu0 0.0
    %v1495 = vand.u32 %v1350, 4294901760
    %v1496 = vsub.f32 %v1350, %v1495
    %v1497 = vand.u32 %v1496, 4294901760
    %v1498 = vsub.f32 %v1496, %v1497
    %v1499 = vand.u32 %v1498, 4294901760
    %1500 = vmatpush1.xpose.msra.mxu0 %v1499
    %1501 = vmatprep.subr.mxu0 0.0
    %v1502 = vand.u32 %v1351, 4294901760
    %v1503 = vsub.f32 %v1351, %v1502
    %v1504 = vand.u32 %v1503, 4294901760
    %v1505 = vsub.f32 %v1503, %v1504
    %v1506 = vand.u32 %v1505, 4294901760
    %1507 = vmatpush1.xpose.msra.mxu0 %v1506
    %1508 = vmatprep.subr.mxu0 0.0
    %v1509 = vand.u32 %v1352, 4294901760
    %v1510 = vsub.f32 %v1352, %v1509
    %v1511 = vand.u32 %v1510, 4294901760
    %v1512 = vsub.f32 %v1510, %v1511
    %v1513 = vand.u32 %v1512, 4294901760
    %1514 = vmatpush1.xpose.msra.mxu0 %v1513
    %1515 = vmatprep.subr.mxu0 0.0
    %v1516 = vand.u32 %v1353, 4294901760
    %v1517 = vsub.f32 %v1353, %v1516
    %v1518 = vand.u32 %v1517, 4294901760
    %v1519 = vsub.f32 %v1517, %v1518
    %v1520 = vand.u32 %v1519, 4294901760
    %1521 = vmatpush1.xpose.msra.mxu0 %v1520
    %1522 = vmatprep.subr.mxu0 0.0
    %v1523 = vand.u32 %v1354, 4294901760
    %v1524 = vsub.f32 %v1354, %v1523
    %v1525 = vand.u32 %v1524, 4294901760
    %v1526 = vsub.f32 %v1524, %v1525
    %v1527 = vand.u32 %v1526, 4294901760
    %1528 = vmatpush1.xpose.msra.mxu0 %v1527
    %1529 = vmatprep.subr.mxu0 0.0
    %v1530 = vand.u32 %v1355, 4294901760
    %v1531 = vsub.f32 %v1355, %v1530
    %v1532 = vand.u32 %v1531, 4294901760
    %v1533 = vsub.f32 %v1531, %v1532
    %v1534 = vand.u32 %v1533, 4294901760
    %1535 = vmatpush1.xpose.msra.mxu0 %v1534
    %1536 = vmatprep.subr.mxu0 0.0
    %v1537 = vand.u32 %v1356, 4294901760
    %v1538 = vsub.f32 %v1356, %v1537
    %v1539 = vand.u32 %v1538, 4294901760
    %v1540 = vsub.f32 %v1538, %v1539
    %v1541 = vand.u32 %v1540, 4294901760
    %1542 = vmatpush1.xpose.msra.mxu0 %v1541
    %1543 = vmatprep.subr.mxu0 0.0
    %v1544 = vand.u32 %v1357, 4294901760
    %v1545 = vsub.f32 %v1357, %v1544
    %v1546 = vand.u32 %v1545, 4294901760
    %v1547 = vsub.f32 %v1545, %v1546
    %v1548 = vand.u32 %v1547, 4294901760
    %1549 = vmatpush1.xpose.msra.mxu0 %v1548
    %1550 = vmatprep.subr.mxu0 0.0
    %v1551 = vand.u32 %v1358, 4294901760
    %v1552 = vsub.f32 %v1358, %v1551
    %v1553 = vand.u32 %v1552, 4294901760
    %v1554 = vsub.f32 %v1552, %v1553
    %v1555 = vand.u32 %v1554, 4294901760
    %1556 = vmatpush1.xpose.msra.mxu0 %v1555
    %1557 = vmatprep.subr.mxu0 0.0
    %1558 = vmatpush1.xpose.msra.mxu0 0.0
    %1559 = vmatprep.subr.mxu0 0.0
    %1560 = vmatpush1.xpose.msra.mxu0 0.0
    %1561 = vmatprep.subr.mxu0 0.0
    %1562 = vmatpush1.xpose.msra.mxu0 0.0
    %1563 = vmatprep.subr.mxu0 0.0
    %1564 = vmatpush1.xpose.msra.mxu0 0.0
    %1565 = vmatprep.subr.mxu0 0.0
    %1566 = vmatpush1.xpose.msra.mxu0 0.0
    %1567 = vmatprep.subr.mxu0 0.0
    %1568 = vmatpush1.xpose.msra.mxu0 0.0
    %1569 = vmatprep.subr.mxu0 0.0
    %1570 = vmatpush1.xpose.msra.mxu0 0.0
    %1571 = vmatprep.subr.mxu0 0.0
    %1572 = vmatpush1.xpose.msra.mxu0 0.0
    %1573 = vmatprep.subr.mxu0 0.0
    %1574 = vmatpush1.xpose.msra.mxu0 0.0
    %1575 = vmatprep.subr.mxu0 0.0
    %1576 = vmatpush1.xpose.msra.mxu0 0.0
    %1577 = vmatprep.subr.mxu0 0.0
    %1578 = vmatpush1.xpose.msra.mxu0 0.0
    %1579 = vmatprep.subr.mxu0 0.0
    %1580 = vmatpush1.xpose.msra.mxu0 0.0
    %1581 = vmatprep.subr.mxu0 0.0
    %1582 = vmatpush1.xpose.msra.mxu0 0.0
    %1583 = vmatprep.subr.mxu0 0.0
    %1584 = vmatpush1.xpose.msra.mxu0 0.0
    %1585 = vmatprep.subr.mxu0 0.0
    %1586 = vmatpush1.xpose.msra.mxu0 0.0
    %1587 = vmatprep.subr.mxu0 0.0
    %1588 = vmatpush1.xpose.msra.mxu0 0.0
    %1589 = vmatprep.mubr.f32.mxu0 0.0
    %1590 = vmatmul.mubr.f32.gmra.mrb[0].mxu0 1.0
    %v1591 = vpop.f32.mrb[0].mxu0
    %v1592 = vadd.f32 %v1442, %v1591
    %v1593 = vpop.f32.mrb[0].mxu0
    %1594 = vdwg.mxu0
    %1595 = vmatprep.subr.mxu0 0.0
    %v1596 = vand.u32 %v1343, 4294901760
    %v1597 = vsub.f32 %v1343, %v1596
    %1598 = vmatpush1.xpose.msra.mxu0 %v1597
    %1599 = vmatprep.subr.mxu0 0.0
    %v1600 = vand.u32 %v1344, 4294901760
    %v1601 = vsub.f32 %v1344, %v1600
    %1602 = vmatpush1.xpose.msra.mxu0 %v1601
    %1603 = vmatprep.subr.mxu0 0.0
    %v1604 = vand.u32 %v1345, 4294901760
    %v1605 = vsub.f32 %v1345, %v1604
    %1606 = vmatpush1.xpose.msra.mxu0 %v1605
    %1607 = vmatprep.subr.mxu0 0.0
    %v1608 = vand.u32 %v1346, 4294901760
    %v1609 = vsub.f32 %v1346, %v1608
    %1610 = vmatpush1.xpose.msra.mxu0 %v1609
    %1611 = vmatprep.subr.mxu0 0.0
    %v1612 = vand.u32 %v1347, 4294901760
    %v1613 = vsub.f32 %v1347, %v1612
    %1614 = vmatpush1.xpose.msra.mxu0 %v1613
    %1615 = vmatprep.subr.mxu0 0.0
    %v1616 = vand.u32 %v1348, 4294901760
    %v1617 = vsub.f32 %v1348, %v1616
    %1618 = vmatpush1.xpose.msra.mxu0 %v1617
    %1619 = vmatprep.subr.mxu0 0.0
    %v1620 = vand.u32 %v1349, 4294901760
    %v1621 = vsub.f32 %v1349, %v1620
    %1622 = vmatpush1.xpose.msra.mxu0 %v1621
    %1623 = vmatprep.subr.mxu0 0.0
    %v1624 = vand.u32 %v1350, 4294901760
    %v1625 = vsub.f32 %v1350, %v1624
    %1626 = vmatpush1.xpose.msra.mxu0 %v1625
    %1627 = vmatprep.subr.mxu0 0.0
    %v1628 = vand.u32 %v1351, 4294901760
    %v1629 = vsub.f32 %v1351, %v1628
    %1630 = vmatpush1.xpose.msra.mxu0 %v1629
    %1631 = vmatprep.subr.mxu0 0.0
    %v1632 = vand.u32 %v1352, 4294901760
    %v1633 = vsub.f32 %v1352, %v1632
    %1634 = vmatpush1.xpose.msra.mxu0 %v1633
    %1635 = vmatprep.subr.mxu0 0.0
    %v1636 = vand.u32 %v1353, 4294901760
    %v1637 = vsub.f32 %v1353, %v1636
    %1638 = vmatpush1.xpose.msra.mxu0 %v1637
    %1639 = vmatprep.subr.mxu0 0.0
    %v1640 = vand.u32 %v1354, 4294901760
    %v1641 = vsub.f32 %v1354, %v1640
    %1642 = vmatpush1.xpose.msra.mxu0 %v1641
    %1643 = vmatprep.subr.mxu0 0.0
    %v1644 = vand.u32 %v1355, 4294901760
    %v1645 = vsub.f32 %v1355, %v1644
    %1646 = vmatpush1.xpose.msra.mxu0 %v1645
    %1647 = vmatprep.subr.mxu0 0.0
    %v1648 = vand.u32 %v1356, 4294901760
    %v1649 = vsub.f32 %v1356, %v1648
    %1650 = vmatpush1.xpose.msra.mxu0 %v1649
    %1651 = vmatprep.subr.mxu0 0.0
    %v1652 = vand.u32 %v1357, 4294901760
    %v1653 = vsub.f32 %v1357, %v1652
    %1654 = vmatpush1.xpose.msra.mxu0 %v1653
    %1655 = vmatprep.subr.mxu0 0.0
    %v1656 = vand.u32 %v1358, 4294901760
    %v1657 = vsub.f32 %v1358, %v1656
    %1658 = vmatpush1.xpose.msra.mxu0 %v1657
    %1659 = vmatprep.subr.mxu0 0.0
    %1660 = vmatpush1.xpose.msra.mxu0 0.0
    %1661 = vmatprep.subr.mxu0 0.0
    %1662 = vmatpush1.xpose.msra.mxu0 0.0
    %1663 = vmatprep.subr.mxu0 0.0
    %1664 = vmatpush1.xpose.msra.mxu0 0.0
    %1665 = vmatprep.subr.mxu0 0.0
    %1666 = vmatpush1.xpose.msra.mxu0 0.0
    %1667 = vmatprep.subr.mxu0 0.0
    %1668 = vmatpush1.xpose.msra.mxu0 0.0
    %1669 = vmatprep.subr.mxu0 0.0
    %1670 = vmatpush1.xpose.msra.mxu0 0.0
    %1671 = vmatprep.subr.mxu0 0.0
    %1672 = vmatpush1.xpose.msra.mxu0 0.0
    %1673 = vmatprep.subr.mxu0 0.0
    %1674 = vmatpush1.xpose.msra.mxu0 0.0
    %1675 = vmatprep.subr.mxu0 0.0
    %1676 = vmatpush1.xpose.msra.mxu0 0.0
    %1677 = vmatprep.subr.mxu0 0.0
    %1678 = vmatpush1.xpose.msra.mxu0 0.0
    %1679 = vmatprep.subr.mxu0 0.0
    %1680 = vmatpush1.xpose.msra.mxu0 0.0
    %1681 = vmatprep.subr.mxu0 0.0
    %1682 = vmatpush1.xpose.msra.mxu0 0.0
    %1683 = vmatprep.subr.mxu0 0.0
    %1684 = vmatpush1.xpose.msra.mxu0 0.0
    %1685 = vmatprep.subr.mxu0 0.0
    %1686 = vmatpush1.xpose.msra.mxu0 0.0
    %1687 = vmatprep.subr.mxu0 0.0
    %1688 = vmatpush1.xpose.msra.mxu0 0.0
    %1689 = vmatprep.subr.mxu0 0.0
    %1690 = vmatpush1.xpose.msra.mxu0 0.0
    %1691 = vmatprep.mubr.f32.mxu0 0.0
    %1692 = vmatmul.mubr.f32.gmra.mrb[0].mxu0 0.0
    %v1693 = vpop.f32.mrb[0].mxu0
    %v1694 = vadd.f32 %v1592, %v1693
    %v1695 = vpop.f32.mrb[0].mxu0
    %1696 = vdwg.mxu0
    %1697 = vmatprep.subr.mxu0 0.0
    %v1698 = vand.u32 %v1343, 4294901760
    %1699 = vmatpush1.xpose.msra.mxu0 %v1698
    %1700 = vmatprep.subr.mxu0 0.0
    %v1701 = vand.u32 %v1344, 4294901760
    %1702 = vmatpush1.xpose.msra.mxu0 %v1701
    %1703 = vmatprep.subr.mxu0 0.0
    %v1704 = vand.u32 %v1345, 4294901760
    %1705 = vmatpush1.xpose.msra.mxu0 %v1704
    %1706 = vmatprep.subr.mxu0 0.0
    %v1707 = vand.u32 %v1346, 4294901760
    %1708 = vmatpush1.xpose.msra.mxu0 %v1707
    %1709 = vmatprep.subr.mxu0 0.0
    %v1710 = vand.u32 %v1347, 4294901760
    %1711 = vmatpush1.xpose.msra.mxu0 %v1710
    %1712 = vmatprep.subr.mxu0 0.0
    %v1713 = vand.u32 %v1348, 4294901760
    %1714 = vmatpush1.xpose.msra.mxu0 %v1713
    %1715 = vmatprep.subr.mxu0 0.0
    %v1716 = vand.u32 %v1349, 4294901760
    %1717 = vmatpush1.xpose.msra.mxu0 %v1716
    %1718 = vmatprep.subr.mxu0 0.0
    %v1719 = vand.u32 %v1350, 4294901760
    %1720 = vmatpush1.xpose.msra.mxu0 %v1719
    %1721 = vmatprep.subr.mxu0 0.0
    %v1722 = vand.u32 %v1351, 4294901760
    %1723 = vmatpush1.xpose.msra.mxu0 %v1722
    %1724 = vmatprep.subr.mxu0 0.0
    %v1725 = vand.u32 %v1352, 4294901760
    %1726 = vmatpush1.xpose.msra.mxu0 %v1725
    %1727 = vmatprep.subr.mxu0 0.0
    %v1728 = vand.u32 %v1353, 4294901760
    %1729 = vmatpush1.xpose.msra.mxu0 %v1728
    %1730 = vmatprep.subr.mxu0 0.0
    %v1731 = vand.u32 %v1354, 4294901760
    %1732 = vmatpush1.xpose.msra.mxu0 %v1731
    %1733 = vmatprep.subr.mxu0 0.0
    %v1734 = vand.u32 %v1355, 4294901760
    %1735 = vmatpush1.xpose.msra.mxu0 %v1734
    %1736 = vmatprep.subr.mxu0 0.0
    %v1737 = vand.u32 %v1356, 4294901760
    %1738 = vmatpush1.xpose.msra.mxu0 %v1737
    %1739 = vmatprep.subr.mxu0 0.0
    %v1740 = vand.u32 %v1357, 4294901760
    %1741 = vmatpush1.xpose.msra.mxu0 %v1740
    %1742 = vmatprep.subr.mxu0 0.0
    %v1743 = vand.u32 %v1358, 4294901760
    %1744 = vmatpush1.xpose.msra.mxu0 %v1743
    %1745 = vmatprep.subr.mxu0 0.0
    %1746 = vmatpush1.xpose.msra.mxu0 0.0
    %1747 = vmatprep.subr.mxu0 0.0
    %1748 = vmatpush1.xpose.msra.mxu0 0.0
    %1749 = vmatprep.subr.mxu0 0.0
    %1750 = vmatpush1.xpose.msra.mxu0 0.0
    %1751 = vmatprep.subr.mxu0 0.0
    %1752 = vmatpush1.xpose.msra.mxu0 0.0
    %1753 = vmatprep.subr.mxu0 0.0
    %1754 = vmatpush1.xpose.msra.mxu0 0.0
    %1755 = vmatprep.subr.mxu0 0.0
    %1756 = vmatpush1.xpose.msra.mxu0 0.0
    %1757 = vmatprep.subr.mxu0 0.0
    %1758 = vmatpush1.xpose.msra.mxu0 0.0
    %1759 = vmatprep.subr.mxu0 0.0
    %1760 = vmatpush1.xpose.msra.mxu0 0.0
    %1761 = vmatprep.subr.mxu0 0.0
    %1762 = vmatpush1.xpose.msra.mxu0 0.0
    %1763 = vmatprep.subr.mxu0 0.0
    %1764 = vmatpush1.xpose.msra.mxu0 0.0
    %1765 = vmatprep.subr.mxu0 0.0
    %1766 = vmatpush1.xpose.msra.mxu0 0.0
    %1767 = vmatprep.subr.mxu0 0.0
    %1768 = vmatpush1.xpose.msra.mxu0 0.0
    %1769 = vmatprep.subr.mxu0 0.0
    %1770 = vmatpush1.xpose.msra.mxu0 0.0
    %1771 = vmatprep.subr.mxu0 0.0
    %1772 = vmatpush1.xpose.msra.mxu0 0.0
    %1773 = vmatprep.subr.mxu0 0.0
    %1774 = vmatpush1.xpose.msra.mxu0 0.0
    %1775 = vmatprep.subr.mxu0 0.0
    %1776 = vmatpush1.xpose.msra.mxu0 0.0
    %1777 = vmatprep.mubr.f32.mxu0 0.0
    %1778 = vmatmul.mubr.f32.gmra.mrb[0].mxu0 0.0
    %v1779 = vpop.f32.mrb[0].mxu0
    %v1780 = vadd.f32 %v1694, %v1779
    %v1781 = vpop.f32.mrb[0].mxu0
    %1782 = vdwg.mxu0
    %1783 = vmatprep.subr.mxu0 0.0
    %v1784 = vand.u32 %v1343, 4294901760
    %v1785 = vsub.f32 %v1343, %v1784
    %v1786 = vand.u32 %v1785, 4294901760
    %1787 = vmatpush1.xpose.msra.mxu0 %v1786
    %1788 = vmatprep.subr.mxu0 0.0
    %v1789 = vand.u32 %v1344, 4294901760
    %v1790 = vsub.f32 %v1344, %v1789
    %v1791 = vand.u32 %v1790, 4294901760
    %1792 = vmatpush1.xpose.msra.mxu0 %v1791
    %1793 = vmatprep.subr.mxu0 0.0
    %v1794 = vand.u32 %v1345, 4294901760
    %v1795 = vsub.f32 %v1345, %v1794
    %v1796 = vand.u32 %v1795, 4294901760
    %1797 = vmatpush1.xpose.msra.mxu0 %v1796
    %1798 = vmatprep.subr.mxu0 0.0
    %v1799 = vand.u32 %v1346, 4294901760
    %v1800 = vsub.f32 %v1346, %v1799
    %v1801 = vand.u32 %v1800, 4294901760
    %1802 = vmatpush1.xpose.msra.mxu0 %v1801
    %1803 = vmatprep.subr.mxu0 0.0
    %v1804 = vand.u32 %v1347, 4294901760
    %v1805 = vsub.f32 %v1347, %v1804
    %v1806 = vand.u32 %v1805, 4294901760
    %1807 = vmatpush1.xpose.msra.mxu0 %v1806
    %1808 = vmatprep.subr.mxu0 0.0
    %v1809 = vand.u32 %v1348, 4294901760
    %v1810 = vsub.f32 %v1348, %v1809
    %v1811 = vand.u32 %v1810, 4294901760
    %1812 = vmatpush1.xpose.msra.mxu0 %v1811
    %1813 = vmatprep.subr.mxu0 0.0
    %v1814 = vand.u32 %v1349, 4294901760
    %v1815 = vsub.f32 %v1349, %v1814
    %v1816 = vand.u32 %v1815, 4294901760
    %1817 = vmatpush1.xpose.msra.mxu0 %v1816
    %1818 = vmatprep.subr.mxu0 0.0
    %v1819 = vand.u32 %v1350, 4294901760
    %v1820 = vsub.f32 %v1350, %v1819
    %v1821 = vand.u32 %v1820, 4294901760
    %1822 = vmatpush1.xpose.msra.mxu0 %v1821
    %1823 = vmatprep.subr.mxu0 0.0
    %v1824 = vand.u32 %v1351, 4294901760
    %v1825 = vsub.f32 %v1351, %v1824
    %v1826 = vand.u32 %v1825, 4294901760
    %1827 = vmatpush1.xpose.msra.mxu0 %v1826
    %1828 = vmatprep.subr.mxu0 0.0
    %v1829 = vand.u32 %v1352, 4294901760
    %v1830 = vsub.f32 %v1352, %v1829
    %v1831 = vand.u32 %v1830, 4294901760
    %1832 = vmatpush1.xpose.msra.mxu0 %v1831
    %1833 = vmatprep.subr.mxu0 0.0
    %v1834 = vand.u32 %v1353, 4294901760
    %v1835 = vsub.f32 %v1353, %v1834
    %v1836 = vand.u32 %v1835, 4294901760
    %1837 = vmatpush1.xpose.msra.mxu0 %v1836
    %1838 = vmatprep.subr.mxu0 0.0
    %v1839 = vand.u32 %v1354, 4294901760
    %v1840 = vsub.f32 %v1354, %v1839
    %v1841 = vand.u32 %v1840, 4294901760
    %1842 = vmatpush1.xpose.msra.mxu0 %v1841
    %1843 = vmatprep.subr.mxu0 0.0
    %v1844 = vand.u32 %v1355, 4294901760
    %v1845 = vsub.f32 %v1355, %v1844
    %v1846 = vand.u32 %v1845, 4294901760
    %1847 = vmatpush1.xpose.msra.mxu0 %v1846
    %1848 = vmatprep.subr.mxu0 0.0
    %v1849 = vand.u32 %v1356, 4294901760
    %v1850 = vsub.f32 %v1356, %v1849
    %v1851 = vand.u32 %v1850, 4294901760
    %1852 = vmatpush1.xpose.msra.mxu0 %v1851
    %1853 = vmatprep.subr.mxu0 0.0
    %v1854 = vand.u32 %v1357, 4294901760
    %v1855 = vsub.f32 %v1357, %v1854
    %v1856 = vand.u32 %v1855, 4294901760
    %1857 = vmatpush1.xpose.msra.mxu0 %v1856
    %1858 = vmatprep.subr.mxu0 0.0
    %v1859 = vand.u32 %v1358, 4294901760
    %v1860 = vsub.f32 %v1358, %v1859
    %v1861 = vand.u32 %v1860, 4294901760
    %1862 = vmatpush1.xpose.msra.mxu0 %v1861
    %1863 = vmatprep.subr.mxu0 0.0
    %1864 = vmatpush1.xpose.msra.mxu0 0.0
    %1865 = vmatprep.subr.mxu0 0.0
    %1866 = vmatpush1.xpose.msra.mxu0 0.0
    %1867 = vmatprep.subr.mxu0 0.0
    %1868 = vmatpush1.xpose.msra.mxu0 0.0
    %1869 = vmatprep.subr.mxu0 0.0
    %1870 = vmatpush1.xpose.msra.mxu0 0.0
    %1871 = vmatprep.subr.mxu0 0.0
    %1872 = vmatpush1.xpose.msra.mxu0 0.0
    %1873 = vmatprep.subr.mxu0 0.0
    %1874 = vmatpush1.xpose.msra.mxu0 0.0
    %1875 = vmatprep.subr.mxu0 0.0
    %1876 = vmatpush1.xpose.msra.mxu0 0.0
    %1877 = vmatprep.subr.mxu0 0.0
    %1878 = vmatpush1.xpose.msra.mxu0 0.0
    %1879 = vmatprep.subr.mxu0 0.0
    %1880 = vmatpush1.xpose.msra.mxu0 0.0
    %1881 = vmatprep.subr.mxu0 0.0
    %1882 = vmatpush1.xpose.msra.mxu0 0.0
    %1883 = vmatprep.subr.mxu0 0.0
    %1884 = vmatpush1.xpose.msra.mxu0 0.0
    %1885 = vmatprep.subr.mxu0 0.0
    %1886 = vmatpush1.xpose.msra.mxu0 0.0
    %1887 = vmatprep.subr.mxu0 0.0
    %1888 = vmatpush1.xpose.msra.mxu0 0.0
    %1889 = vmatprep.subr.mxu0 0.0
    %1890 = vmatpush1.xpose.msra.mxu0 0.0
    %1891 = vmatprep.subr.mxu0 0.0
    %1892 = vmatpush1.xpose.msra.mxu0 0.0
    %1893 = vmatprep.subr.mxu0 0.0
    %1894 = vmatpush1.xpose.msra.mxu0 0.0
    %1895 = vmatprep.mubr.f32.mxu0 0.0
    %1896 = vmatmul.mubr.f32.gmra.mrb[0].mxu0 1.0
    %v1897 = vpop.f32.mrb[0].mxu0
    %v1898 = vadd.f32 %v1780, %v1897
    %v1899 = vpop.f32.mrb[0].mxu0
    %1900 = vdwg.mxu0
    %1901 = vmatprep.subr.mxu0 0.0
    %v1902 = vand.u32 %v1343, 4294901760
    %1903 = vmatpush1.xpose.msra.mxu0 %v1902
    %1904 = vmatprep.subr.mxu0 0.0
    %v1905 = vand.u32 %v1344, 4294901760
    %1906 = vmatpush1.xpose.msra.mxu0 %v1905
    %1907 = vmatprep.subr.mxu0 0.0
    %v1908 = vand.u32 %v1345, 4294901760
    %1909 = vmatpush1.xpose.msra.mxu0 %v1908
    %1910 = vmatprep.subr.mxu0 0.0
    %v1911 = vand.u32 %v1346, 4294901760
    %1912 = vmatpush1.xpose.msra.mxu0 %v1911
    %1913 = vmatprep.subr.mxu0 0.0
    %v1914 = vand.u32 %v1347, 4294901760
    %1915 = vmatpush1.xpose.msra.mxu0 %v1914
    %1916 = vmatprep.subr.mxu0 0.0
    %v1917 = vand.u32 %v1348, 4294901760
    %1918 = vmatpush1.xpose.msra.mxu0 %v1917
    %1919 = vmatprep.subr.mxu0 0.0
    %v1920 = vand.u32 %v1349, 4294901760
    %1921 = vmatpush1.xpose.msra.mxu0 %v1920
    %1922 = vmatprep.subr.mxu0 0.0
    %v1923 = vand.u32 %v1350, 4294901760
    %1924 = vmatpush1.xpose.msra.mxu0 %v1923
    %1925 = vmatprep.subr.mxu0 0.0
    %v1926 = vand.u32 %v1351, 4294901760
    %1927 = vmatpush1.xpose.msra.mxu0 %v1926
    %1928 = vmatprep.subr.mxu0 0.0
    %v1929 = vand.u32 %v1352, 4294901760
    %1930 = vmatpush1.xpose.msra.mxu0 %v1929
    %1931 = vmatprep.subr.mxu0 0.0
    %v1932 = vand.u32 %v1353, 4294901760
    %1933 = vmatpush1.xpose.msra.mxu0 %v1932
    %1934 = vmatprep.subr.mxu0 0.0
    %v1935 = vand.u32 %v1354, 4294901760
    %1936 = vmatpush1.xpose.msra.mxu0 %v1935
    %1937 = vmatprep.subr.mxu0 0.0
    %v1938 = vand.u32 %v1355, 4294901760
    %1939 = vmatpush1.xpose.msra.mxu0 %v1938
    %1940 = vmatprep.subr.mxu0 0.0
    %v1941 = vand.u32 %v1356, 4294901760
    %1942 = vmatpush1.xpose.msra.mxu0 %v1941
    %1943 = vmatprep.subr.mxu0 0.0
    %v1944 = vand.u32 %v1357, 4294901760
    %1945 = vmatpush1.xpose.msra.mxu0 %v1944
    %1946 = vmatprep.subr.mxu0 0.0
    %v1947 = vand.u32 %v1358, 4294901760
    %1948 = vmatpush1.xpose.msra.mxu0 %v1947
    %1949 = vmatprep.subr.mxu0 0.0
    %1950 = vmatpush1.xpose.msra.mxu0 0.0
    %1951 = vmatprep.subr.mxu0 0.0
    %1952 = vmatpush1.xpose.msra.mxu0 0.0
    %1953 = vmatprep.subr.mxu0 0.0
    %1954 = vmatpush1.xpose.msra.mxu0 0.0
    %1955 = vmatprep.subr.mxu0 0.0
    %1956 = vmatpush1.xpose.msra.mxu0 0.0
    %1957 = vmatprep.subr.mxu0 0.0
    %1958 = vmatpush1.xpose.msra.mxu0 0.0
    %1959 = vmatprep.subr.mxu0 0.0
    %1960 = vmatpush1.xpose.msra.mxu0 0.0
    %1961 = vmatprep.subr.mxu0 0.0
    %1962 = vmatpush1.xpose.msra.mxu0 0.0
    %1963 = vmatprep.subr.mxu0 0.0
    %1964 = vmatpush1.xpose.msra.mxu0 0.0
    %1965 = vmatprep.subr.mxu0 0.0
    %1966 = vmatpush1.xpose.msra.mxu0 0.0
    %1967 = vmatprep.subr.mxu0 0.0
    %1968 = vmatpush1.xpose.msra.mxu0 0.0
    %1969 = vmatprep.subr.mxu0 0.0
    %1970 = vmatpush1.xpose.msra.mxu0 0.0
    %1971 = vmatprep.subr.mxu0 0.0
    %1972 = vmatpush1.xpose.msra.mxu0 0.0
    %1973 = vmatprep.subr.mxu0 0.0
    %1974 = vmatpush1.xpose.msra.mxu0 0.0
    %1975 = vmatprep.subr.mxu0 0.0
    %1976 = vmatpush1.xpose.msra.mxu0 0.0
    %1977 = vmatprep.subr.mxu0 0.0
    %1978 = vmatpush1.xpose.msra.mxu0 0.0
    %1979 = vmatprep.subr.mxu0 0.0
    %1980 = vmatpush1.xpose.msra.mxu0 0.0
    %1981 = vmatprep.mubr.f32.mxu0 0.0
    %1982 = vmatmul.mubr.f32.gmra.mrb[0].mxu0 1.0
    %v1983 = vpop.f32.mrb[0].mxu0
    %v1984 = vadd.f32 %v1898, %v1983
    %v1985 = vpop.f32.mrb[0].mxu0
    %1986 = vdwg.mxu0
    %v1987 = vmul.f32 %v1340, %v1984
    %v1988 = vmax.f32 %v1987, 1e-16
    %v1989 = vrsqrt.pop %v1988
    %v1990 = vmul.f32 %v696, %v1989
    %1991 = vst [vmem:[#allocation5] sm:$0x1] %v1990
    // Predicated region
    $region10: #{tpu_custom_call.1} parent=1 // pred_check
      _
    $region11: #{tpu_custom_call.1} parent=1 // pred_check_branch
      %1993 = sbr.rel (0) target = $region13
    $region12: #{tpu_custom_call.1} parent=1 // pred_region
      %s1995 = ssub.s32 16, 16
      %1996 = vsyncadd [#allocation4], %s1995
      %s1998 = sshll.u32 [#allocation5], 4
      %s1999 = int_to_ptr.vmem [resolvable:$true] %s1998
      %2001 = dma.vmem_to_hbm [thread:$0]  %s1999, 16, %s1, [#allocation4]
    $region13: #{tpu_custom_call.1} parent=1 // pred_fallthru
      _
    // Predicated region
    $region14: #{tpu_custom_call.1} parent=1 // pred_check
      _
    $region15: #{tpu_custom_call.1} parent=1 // pred_check_branch
      %2003 = sbr.rel (0) target = $region17
    $region16: #{tpu_custom_call.1} parent=1 // pred_region
      %2004 = dma.done [#allocation4], 16
    $region17: #{tpu_custom_call.1} parent=1 // pred_fallthru
      _
    %2005 = vsyncpa [#allocation3], 1
    %2006 = vsyncpa [#allocation4], 1

</llo_original>
